<compile_context>
chip_gen: v6e
topology: v6e:2x2x1
jax: 0.10.0
libtpu: 0.0.40
codegen_flags: <defaults>
</compile_context>

<pallas_src>
import functools

import jax
import jax.numpy as jnp
from jax import lax
from jax.experimental import pallas as pl
from jax.experimental.pallas import tpu as pltpu

C_IN = 10                      # input / output channels
C_MID = 16                     # hidden channels ("siz")
KH = KW = 3
K_IM2COL = KH * KW * C_MID     # 144: contraction dim of both 3x3 convs

# MXU operand dtype.  float32 keeps exact parity with the PyTorch reference.
# On v6e / v7x, jnp.bfloat16 operands (accumulation stays f32 via
# preferred_element_type) roughly double MXU throughput; keep f32 on v5e.
MATMUL_DTYPE = jnp.float32


def _make_kernel(H, W, n_block):
    """Fused conv3x3 -> relu -> conv3x3 -> relu -> conv1x1 -> +residual."""
    HW = H * W
    marg_x = W + 1                              # zero margin of the input slab
    flat_x = HW + 2 * marg_x
    marg_h = ((W + 1 + 127) // 128) * 128       # 128-aligned margin for h1 slab
    flat_h = HW + 2 * marg_h
    taps = [(dy, dx) for dy in range(KH) for dx in range(KW)]

    def kernel(xf_ref, w1_ref, b1_ref, w2_ref, b2_ref, w3_ref, b3_ref,
               o_ref, cols_ref, h1f_ref):
        # xf_ref : (1, C_MID, n_block*flat_x) inputs, channels padded 10->16,
        #          spatial flattened with a zero margin of W+1 per side.
        # w1_ref : (C_MID, 144) conv1 weight, im2col layout (cin zero-padded).
        # w2_ref : (C_MID, 144) conv2 weight, im2col layout.
        # w3_ref : (C_IN, C_MID) 1x1 conv weight.     b*_ref: (C, 1) biases.
        # o_ref  : (1, C_IN, n_block*HW)
        # cols_ref: (144, n_block*HW) f32  -- shared im2col slab (both convs)
        # h1f_ref : (C_MID, n_block*flat_h) f32 -- conv1 output, zero margins

        # Column index of each lane inside its image row (HW is a multiple of
        # W); used to zero the taps that would wrap around a row edge.
        col = lax.broadcasted_iota(jnp.int32, (1, HW), 1) % W
        not_first = col != 0
        not_last = col != (W - 1)

        def shifted(src, base, dy, dx):
            # Tap (dy, dx) of the zero-padded image == lane slice at offset
            # (dy-1)*W + (dx-1) of the zero-margined flat slab, with the
            # row-wrapping lanes masked to zero.
            s = (dy - 1) * W + (dx - 1)
            patch = src[:, base + s: base + s + HW]          # (C_MID, HW)
            if dx == 0:
                patch = jnp.where(not_first, patch, 0.0)
            elif dx == 2:
                patch = jnp.where(not_last, patch, 0.0)
            return patch

        def im2col_conv_relu(src, marg, flat, w_ref, b_ref):
            for b in range(n_block):
                base = b * flat + marg
                for t, (dy, dx) in enumerate(taps):
                    cols_ref[t * C_MID:(t + 1) * C_MID,
                             b * HW:(b + 1) * HW] = shifted(src, base, dy, dx)
            acc = jnp.dot(w_ref[...].astype(MATMUL_DTYPE),
                          cols_ref[...].astype(MATMUL_DTYPE),
                          preferred_element_type=jnp.float32)
            return jnp.maximum(acc + b_ref[...], 0.0)        # (C_MID, nb*HW)

        xf = xf_ref[0]                                       # (C_MID, nb*flat_x)

        # ---- conv1 (3x3, pad=1) + ReLU: one (16,144)x(144,nb*HW) matmul ----
        h1 = im2col_conv_relu(xf, marg_x, flat_x, w1_ref, b1_ref)

        # ---- conv2 (3x3, pad=1) + ReLU: stage h1 into a zero-margined slab --
        h1f_ref[...] = jnp.zeros_like(h1f_ref)
        for b in range(n_block):
            h1f_ref[:, b * flat_h + marg_h: b * flat_h + marg_h + HW] = (
                h1[:, b * HW:(b + 1) * HW])
        h2 = im2col_conv_relu(h1f_ref, marg_h, flat_h, w2_ref, b2_ref)

        # Dropout2d(p=0.1) is identity at inference.
        # TODO(synk): training-mode channel dropout (Dropout2d) not implemented.

        # ---- 1x1 conv + bias + residual, lane-dense store -------------------
        y = jnp.dot(w3_ref[...].astype(MATMUL_DTYPE),
                    h2.astype(MATMUL_DTYPE),
                    preferred_element_type=jnp.float32) + b3_ref[...]  # (10, nb*HW)
        for b in range(n_block):
            res = xf[0:C_IN, b * flat_x + marg_x: b * flat_x + marg_x + HW]
            o_ref[0, :, b * HW:(b + 1) * HW] = res + y[:, b * HW:(b + 1) * HW]

    return kernel, flat_x, flat_h


@functools.partial(jax.jit, static_argnames=("batch_block",))
def task301_forward(x_nchw, w1, b1, w2, b2, w3, b3, *, batch_block=1):
    """Task301Net forward.  x_nchw: (N, 10, H, W) f32 -> (N, 10, H, W) f32."""
    N, C, H, W = x_nchw.shape
    assert C == C_IN and N % batch_block == 0
    nb = batch_block
    HW = H * W

    kernel, flat_x, flat_h = _make_kernel(H, W, nb)
    marg_x = W + 1

    # Input packing: NCHW -> (N//nb, C_MID, nb*flat_x).  Channels zero-padded
    # 10->16 (aligned 16-row im2col stores), spatial flattened and margined by
    # W+1 zeros per side so each 3x3 tap becomes a static lane slice.
    xf = x_nchw.astype(jnp.float32).reshape(N, C_IN, HW)
    xf = jnp.pad(xf, ((0, 0), (0, C_MID - C_IN), (marg_x, marg_x)))
    xf = xf.reshape(N // nb, nb, C_MID, flat_x).transpose(0, 2, 1, 3)
    xf = xf.reshape(N // nb, C_MID, nb * flat_x)

    # Weight packing into im2col layout: OIHW -> [o, (dy*3+dx)*16 + i].
    w1p = jnp.transpose(w1.astype(jnp.float32), (0, 2, 3, 1))      # (O,KH,KW,I)
    w1p = jnp.pad(w1p, ((0, 0), (0, 0), (0, 0), (0, C_MID - C_IN)))
    w1p = w1p.reshape(C_MID, K_IM2COL)
    w2p = jnp.transpose(w2.astype(jnp.float32), (0, 2, 3, 1)).reshape(C_MID,
                                                                      K_IM2COL)
    w3p = w3.astype(jnp.float32)[:, :, 0, 0]                       # (10, 16)
    b1c = b1.astype(jnp.float32).reshape(C_MID, 1)
    b2c = b2.astype(jnp.float32).reshape(C_MID, 1)
    b3c = b3.astype(jnp.float32).reshape(C_IN, 1)

    out = pl.pallas_call(
        kernel,
        out_shape=jax.ShapeDtypeStruct((N // nb, C_IN, nb * HW), jnp.float32),
        grid_spec=pltpu.PrefetchScalarGridSpec(
            num_scalar_prefetch=0,
            grid=(N // nb,),
            in_specs=[
                pl.BlockSpec((1, C_MID, nb * flat_x), lambda n: (n, 0, 0)),
                pl.BlockSpec((C_MID, K_IM2COL), lambda n: (0, 0)),
                pl.BlockSpec((C_MID, 1), lambda n: (0, 0)),
                pl.BlockSpec((C_MID, K_IM2COL), lambda n: (0, 0)),
                pl.BlockSpec((C_MID, 1), lambda n: (0, 0)),
                pl.BlockSpec((C_IN, C_MID), lambda n: (0, 0)),
                pl.BlockSpec((C_IN, 1), lambda n: (0, 0)),
            ],
            out_specs=pl.BlockSpec((1, C_IN, nb * HW), lambda n: (n, 0, 0)),
            scratch_shapes=[
                pltpu.VMEM((K_IM2COL, nb * HW), jnp.float32),   # im2col slab
                pltpu.VMEM((C_MID, nb * flat_h), jnp.float32),  # margined h1
            ],
        ),
        compiler_params=pltpu.CompilerParams(
            dimension_semantics=("parallel",)),
    )(xf, w1p, b1c, w2p, b2c, w3p, b3c)

    # (N//nb, C_IN, nb*HW) -> (N, C_IN, H, W)
    out = out.reshape(N // nb, C_IN, nb, HW).transpose(0, 2, 1, 3)
    return out.reshape(N, C_IN, H, W)


def _reference_forward(x, w1, b1, w2, b2, w3, b3):
    """Pure-XLA reference of the same forward pass (for a sanity check)."""
    dn = ("NCHW", "OIHW", "NCHW")
    hp = lax.Precision.HIGHEST
    h = lax.conv_general_dilated(x, w1, (1, 1), ((1, 1), (1, 1)),
                                 dimension_numbers=dn, precision=hp)
    h = jnp.maximum(h + b1[None, :, None, None], 0.0)
    h = lax.conv_general_dilated(h, w2, (1, 1), ((1, 1), (1, 1)),
                                 dimension_numbers=dn, precision=hp)
    h = jnp.maximum(h + b2[None, :, None, None], 0.0)
    y = lax.conv_general_dilated(h, w3, (1, 1), ((0, 0), (0, 0)),
                                 dimension_numbers=dn, precision=hp)
    return x + y + b3[None, :, None, None]


def _init_params(key):
    """Deterministic PyTorch-style uniform init."""
    ks = jax.random.split(key, 6)
    bd1 = 1.0 / (C_IN * KH * KW) ** 0.5
    w1 = jax.random.uniform(ks[0], (C_MID, C_IN, KH, KW), jnp.float32, -bd1, bd1)
    b1 = jax.random.uniform(ks[1], (C_MID,), jnp.float32, -bd1, bd1)
    bd2 = 1.0 / (C_MID * KH * KW) ** 0.5
    w2 = jax.random.uniform(ks[2], (C_MID, C_MID, KH, KW), jnp.float32, -bd2, bd2)
    b2 = jax.random.uniform(ks[3], (C_MID,), jnp.float32, -bd2, bd2)
    bd3 = 1.0 / C_MID ** 0.5
    w3 = jax.random.uniform(ks[4], (C_IN, C_MID, 1, 1), jnp.float32, -bd3, bd3)
    b3 = jax.random.uniform(ks[5], (C_IN,), jnp.float32, -bd3, bd3)
    return w1, b1, w2, b2, w3, b3


if __name__ == "__main__":
    key = jax.random.PRNGKey(0)
    k_x, k_p = jax.random.split(key)

    N, H, W = 2, 16, 16
    x = jax.random.normal(k_x, (N, C_IN, H, W), jnp.float32)   # NCHW like PyTorch
    params = _init_params(k_p)

    out = task301_forward(x, *params)
    jax.block_until_ready(out)
    assert out.shape == (N, C_IN, H, W)

    ref = _reference_forward(x, *params)
    max_err = float(jnp.max(jnp.abs(out - ref)))
    assert max_err < 1e-1, f"kernel/reference mismatch: max abs err {max_err}"

    print("KERNEL_OK")
</pallas_src>

<mosaic_0001>
module attributes {stable_mosaic.version = 11 : i64} {
  func.func @kernel(%arg0: i32, %arg1: memref<1x16x290xf32, #tpu.memory_space<vmem>>, %arg2: memref<16x144xf32, #tpu.memory_space<vmem>>, %arg3: memref<16x1xf32, #tpu.memory_space<vmem>>, %arg4: memref<16x144xf32, #tpu.memory_space<vmem>>, %arg5: memref<16x1xf32, #tpu.memory_space<vmem>>, %arg6: memref<10x16xf32, #tpu.memory_space<vmem>>, %arg7: memref<10x1xf32, #tpu.memory_space<vmem>>, %arg8: memref<1x10x256xf32, #tpu.memory_space<vmem>>, %arg9: memref<144x256xf32, #tpu.memory_space<vmem>>, %arg10: memref<16x512xf32, #tpu.memory_space<vmem>>) attributes {dimension_semantics = [#tpu.dimension_semantics<parallel>], iteration_bounds = array<i64: 2>, scalar_prefetch = 0 : i64, scratch_operands = 2 : i64, tpu.core_type = #tpu.core_type<tc>, window_params = [{transform_indices = @transform_0, window_bounds = array<i64: 1, 16, 290>}, {pipeline_mode = #tpu.pipeline_mode<synchronous>, transform_indices = @transform_1, window_bounds = array<i64: 16, 144>}, {pipeline_mode = #tpu.pipeline_mode<synchronous>, transform_indices = @transform_2, window_bounds = array<i64: 16, 1>}, {pipeline_mode = #tpu.pipeline_mode<synchronous>, transform_indices = @transform_3, window_bounds = array<i64: 16, 144>}, {pipeline_mode = #tpu.pipeline_mode<synchronous>, transform_indices = @transform_4, window_bounds = array<i64: 16, 1>}, {pipeline_mode = #tpu.pipeline_mode<synchronous>, transform_indices = @transform_5, window_bounds = array<i64: 10, 16>}, {pipeline_mode = #tpu.pipeline_mode<synchronous>, transform_indices = @transform_6, window_bounds = array<i64: 10, 1>}, {transform_indices = @transform_7, window_bounds = array<i64: 1, 10, 256>}]} {
    %0 = tpu.iota {dimensions = array<i32: 1>} : vector<1x256xi32>
    %c16_i32 = arith.constant 16 : i32
    %c0_i32 = arith.constant 0 : i32
    %1 = arith.cmpi eq, %c16_i32, %c0_i32 : i32
    %c1_i32 = arith.constant 1 : i32
    %2 = arith.select %1, %c1_i32, %c16_i32 : i32
    %3 = vector.broadcast %2 : i32 to vector<1x256xi32>
    %4 = arith.remsi %0, %3 : vector<1x256xi32>
    %c0_i32_0 = arith.constant 0 : i32
    %5 = vector.broadcast %c0_i32_0 : i32 to vector<1x256xi32>
    %6 = arith.cmpi ne, %4, %5 : vector<1x256xi32>
    %c0_i32_1 = arith.constant 0 : i32
    %7 = vector.broadcast %c0_i32_1 : i32 to vector<1x256xi32>
    %8 = arith.cmpi slt, %4, %7 : vector<1x256xi32>
    %c0_i32_2 = arith.constant 0 : i32
    %9 = arith.cmpi slt, %2, %c0_i32_2 : i32
    %10 = vector.broadcast %9 : i1 to vector<1x256xi1>
    %11 = vector.broadcast %10 : vector<1x256xi1> to vector<1x256xi1>
    %12 = arith.xori %8, %11 : vector<1x256xi1>
    %13 = arith.andi %12, %6 : vector<1x256xi1>
    %14 = vector.broadcast %2 : i32 to vector<1x256xi32>
    %15 = arith.addi %4, %14 : vector<1x256xi32>
    %16 = arith.select %13, %15, %4 : vector<1x256xi1>, vector<1x256xi32>
    %c0_i32_3 = arith.constant 0 : i32
    %17 = vector.broadcast %c0_i32_3 : i32 to vector<1x256xi32>
    %18 = arith.cmpi ne, %16, %17 : vector<1x256xi32>
    %c15_i32 = arith.constant 15 : i32
    %19 = vector.broadcast %c15_i32 : i32 to vector<1x256xi32>
    %20 = arith.cmpi ne, %16, %19 : vector<1x256xi32>
    %c0 = arith.constant 0 : index
    %c0_4 = arith.constant 0 : index
    %c0_5 = arith.constant 0 : index
    %21 = vector.load %arg1[%c0, %c0_4, %c0_5] : memref<1x16x290xf32, #tpu.memory_space<vmem>>, vector<1x16x290xf32>
    %22 = vector.shape_cast %21 : vector<1x16x290xf32> to vector<16x290xf32>
    %23 = vector.extract_strided_slice %22 {offsets = [0, 0], sizes = [16, 256], strides = [1, 1]} : vector<16x290xf32> to vector<16x256xf32>
    %cst = arith.constant 0.000000e+00 : f32
    %24 = vector.shape_cast %18 : vector<1x256xi1> to vector<1x256xi1>
    %25 = vector.broadcast %24 : vector<1x256xi1> to vector<16x256xi1>
    %26 = vector.broadcast %cst : f32 to vector<16x256xf32>
    %27 = arith.select %25, %23, %26 : vector<16x256xi1>, vector<16x256xf32>
    %c0_6 = arith.constant 0 : index
    %c0_7 = arith.constant 0 : index
    %28 = vector.load %arg9[%c0_6, %c0_7] : memref<144x256xf32, #tpu.memory_space<vmem>>, vector<16x256xf32>
    tpu.vector_store %arg9[%c0_6, %c0_7], %27 {strides = array<i32>} : memref<144x256xf32, #tpu.memory_space<vmem>>, vector<16x256xf32>,
    %29 = vector.extract_strided_slice %22 {offsets = [0, 1], sizes = [16, 256], strides = [1, 1]} : vector<16x290xf32> to vector<16x256xf32>
    %c16 = arith.constant 16 : index
    %c0_8 = arith.constant 0 : index
    %30 = vector.load %arg9[%c16, %c0_8] : memref<144x256xf32, #tpu.memory_space<vmem>>, vector<16x256xf32>
    tpu.vector_store %arg9[%c16, %c0_8], %29 {strides = array<i32>} : memref<144x256xf32, #tpu.memory_space<vmem>>, vector<16x256xf32>,
    %31 = vector.extract_strided_slice %22 {offsets = [0, 2], sizes = [16, 256], strides = [1, 1]} : vector<16x290xf32> to vector<16x256xf32>
    %cst_9 = arith.constant 0.000000e+00 : f32
    %32 = vector.shape_cast %20 : vector<1x256xi1> to vector<1x256xi1>
    %33 = vector.broadcast %32 : vector<1x256xi1> to vector<16x256xi1>
    %34 = vector.broadcast %cst_9 : f32 to vector<16x256xf32>
    %35 = arith.select %33, %31, %34 : vector<16x256xi1>, vector<16x256xf32>
    %c32 = arith.constant 32 : index
    %c0_10 = arith.constant 0 : index
    %36 = vector.load %arg9[%c32, %c0_10] : memref<144x256xf32, #tpu.memory_space<vmem>>, vector<16x256xf32>
    tpu.vector_store %arg9[%c32, %c0_10], %35 {strides = array<i32>} : memref<144x256xf32, #tpu.memory_space<vmem>>, vector<16x256xf32>,
    %37 = vector.extract_strided_slice %22 {offsets = [0, 16], sizes = [16, 256], strides = [1, 1]} : vector<16x290xf32> to vector<16x256xf32>
    %cst_11 = arith.constant 0.000000e+00 : f32
    %38 = vector.shape_cast %18 : vector<1x256xi1> to vector<1x256xi1>
    %39 = vector.broadcast %38 : vector<1x256xi1> to vector<16x256xi1>
    %40 = vector.broadcast %cst_11 : f32 to vector<16x256xf32>
    %41 = arith.select %39, %37, %40 : vector<16x256xi1>, vector<16x256xf32>
    %c48 = arith.constant 48 : index
    %c0_12 = arith.constant 0 : index
    %42 = vector.load %arg9[%c48, %c0_12] : memref<144x256xf32, #tpu.memory_space<vmem>>, vector<16x256xf32>
    tpu.vector_store %arg9[%c48, %c0_12], %41 {strides = array<i32>} : memref<144x256xf32, #tpu.memory_space<vmem>>, vector<16x256xf32>,
    %43 = vector.extract_strided_slice %22 {offsets = [0, 17], sizes = [16, 256], strides = [1, 1]} : vector<16x290xf32> to vector<16x256xf32>
    %c64 = arith.constant 64 : index
    %c0_13 = arith.constant 0 : index
    %44 = vector.load %arg9[%c64, %c0_13] : memref<144x256xf32, #tpu.memory_space<vmem>>, vector<16x256xf32>
    tpu.vector_store %arg9[%c64, %c0_13], %43 {strides = array<i32>} : memref<144x256xf32, #tpu.memory_space<vmem>>, vector<16x256xf32>,
    %45 = vector.extract_strided_slice %22 {offsets = [0, 18], sizes = [16, 256], strides = [1, 1]} : vector<16x290xf32> to vector<16x256xf32>
    %cst_14 = arith.constant 0.000000e+00 : f32
    %46 = vector.shape_cast %20 : vector<1x256xi1> to vector<1x256xi1>
    %47 = vector.broadcast %46 : vector<1x256xi1> to vector<16x256xi1>
    %48 = vector.broadcast %cst_14 : f32 to vector<16x256xf32>
    %49 = arith.select %47, %45, %48 : vector<16x256xi1>, vector<16x256xf32>
    %c80 = arith.constant 80 : index
    %c0_15 = arith.constant 0 : index
    %50 = vector.load %arg9[%c80, %c0_15] : memref<144x256xf32, #tpu.memory_space<vmem>>, vector<16x256xf32>
    tpu.vector_store %arg9[%c80, %c0_15], %49 {strides = array<i32>} : memref<144x256xf32, #tpu.memory_space<vmem>>, vector<16x256xf32>,
    %51 = vector.extract_strided_slice %22 {offsets = [0, 32], sizes = [16, 256], strides = [1, 1]} : vector<16x290xf32> to vector<16x256xf32>
    %cst_16 = arith.constant 0.000000e+00 : f32
    %52 = vector.shape_cast %18 : vector<1x256xi1> to vector<1x256xi1>
    %53 = vector.broadcast %52 : vector<1x256xi1> to vector<16x256xi1>
    %54 = vector.broadcast %cst_16 : f32 to vector<16x256xf32>
    %55 = arith.select %53, %51, %54 : vector<16x256xi1>, vector<16x256xf32>
    %c96 = arith.constant 96 : index
    %c0_17 = arith.constant 0 : index
    %56 = vector.load %arg9[%c96, %c0_17] : memref<144x256xf32, #tpu.memory_space<vmem>>, vector<16x256xf32>
    tpu.vector_store %arg9[%c96, %c0_17], %55 {strides = array<i32>} : memref<144x256xf32, #tpu.memory_space<vmem>>, vector<16x256xf32>,
    %57 = vector.extract_strided_slice %22 {offsets = [0, 33], sizes = [16, 256], strides = [1, 1]} : vector<16x290xf32> to vector<16x256xf32>
    %c112 = arith.constant 112 : index
    %c0_18 = arith.constant 0 : index
    %58 = vector.load %arg9[%c112, %c0_18] : memref<144x256xf32, #tpu.memory_space<vmem>>, vector<16x256xf32>
    tpu.vector_store %arg9[%c112, %c0_18], %57 {strides = array<i32>} : memref<144x256xf32, #tpu.memory_space<vmem>>, vector<16x256xf32>,
    %59 = vector.extract_strided_slice %22 {offsets = [0, 34], sizes = [16, 256], strides = [1, 1]} : vector<16x290xf32> to vector<16x256xf32>
    %cst_19 = arith.constant 0.000000e+00 : f32
    %60 = vector.shape_cast %20 : vector<1x256xi1> to vector<1x256xi1>
    %61 = vector.broadcast %60 : vector<1x256xi1> to vector<16x256xi1>
    %62 = vector.broadcast %cst_19 : f32 to vector<16x256xf32>
    %63 = arith.select %61, %59, %62 : vector<16x256xi1>, vector<16x256xf32>
    %c128 = arith.constant 128 : index
    %c0_20 = arith.constant 0 : index
    %64 = vector.load %arg9[%c128, %c0_20] : memref<144x256xf32, #tpu.memory_space<vmem>>, vector<16x256xf32>
    tpu.vector_store %arg9[%c128, %c0_20], %63 {strides = array<i32>} : memref<144x256xf32, #tpu.memory_space<vmem>>, vector<16x256xf32>,
    %c0_21 = arith.constant 0 : index
    %c0_22 = arith.constant 0 : index
    %65 = vector.load %arg2[%c0_21, %c0_22] : memref<16x144xf32, #tpu.memory_space<vmem>>, vector<16x144xf32>
    %c0_23 = arith.constant 0 : index
    %c0_24 = arith.constant 0 : index
    %66 = vector.load %arg9[%c0_23, %c0_24] : memref<144x256xf32, #tpu.memory_space<vmem>>, vector<144x256xf32>
    %cst_25 = arith.constant dense<0.000000e+00> : vector<16x256xf32>
    %67 = tpu.matmul %65, %66, %cst_25 {dimension_numbers = #tpu.dot_dimension_numbers<[1], [0], [0], [1], [0, 0, 1, 1], [], []>} : vector<16x144xf32>, vector<144x256xf32>, vector<16x256xf32> -> vector<16x256xf32>
    %c0_26 = arith.constant 0 : index
    %c0_27 = arith.constant 0 : index
    %68 = vector.load %arg3[%c0_26, %c0_27] : memref<16x1xf32, #tpu.memory_space<vmem>>, vector<16x1xf32>
    %69 = vector.broadcast %68 : vector<16x1xf32> to vector<16x256xf32>
    %70 = arith.addf %67, %69 : vector<16x256xf32>
    %cst_28 = arith.constant 0.000000e+00 : f32
    %71 = vector.broadcast %cst_28 : f32 to vector<16x256xf32>
    %72 = arith.maximumf %70, %71 : vector<16x256xf32>
    %cst_29 = arith.constant 0.000000e+00 : f32
    %73 = vector.broadcast %cst_29 : f32 to vector<16x512xf32>
    %c0_30 = arith.constant 0 : index
    %c0_31 = arith.constant 0 : index
    %74 = vector.load %arg10[%c0_30, %c0_31] : memref<16x512xf32, #tpu.memory_space<vmem>>, vector<16x512xf32>
    tpu.vector_store %arg10[%c0_30, %c0_31], %73 {strides = array<i32>} : memref<16x512xf32, #tpu.memory_space<vmem>>, vector<16x512xf32>,
    %c0_32 = arith.constant 0 : index
    %c128_33 = arith.constant 128 : index
    %75 = vector.load %arg10[%c0_32, %c128_33] : memref<16x512xf32, #tpu.memory_space<vmem>>, vector<16x256xf32>
    tpu.vector_store %arg10[%c0_32, %c128_33], %72 {strides = array<i32>} : memref<16x512xf32, #tpu.memory_space<vmem>>, vector<16x256xf32>,
    %c0_34 = arith.constant 0 : index
    %c111 = arith.constant 111 : index
    %76 = vector.load %arg10[%c0_34, %c111] : memref<16x512xf32, #tpu.memory_space<vmem>>, vector<16x256xf32>
    %cst_35 = arith.constant 0.000000e+00 : f32
    %77 = vector.shape_cast %18 : vector<1x256xi1> to vector<1x256xi1>
    %78 = vector.broadcast %77 : vector<1x256xi1> to vector<16x256xi1>
    %79 = vector.broadcast %cst_35 : f32 to vector<16x256xf32>
    %80 = arith.select %78, %76, %79 : vector<16x256xi1>, vector<16x256xf32>
    %c0_36 = arith.constant 0 : index
    %c0_37 = arith.constant 0 : index
    %81 = vector.load %arg9[%c0_36, %c0_37] : memref<144x256xf32, #tpu.memory_space<vmem>>, vector<16x256xf32>
    tpu.vector_store %arg9[%c0_36, %c0_37], %80 {strides = array<i32>} : memref<144x256xf32, #tpu.memory_space<vmem>>, vector<16x256xf32>,
    %c0_38 = arith.constant 0 : index
    %c112_39 = arith.constant 112 : index
    %82 = vector.load %arg10[%c0_38, %c112_39] : memref<16x512xf32, #tpu.memory_space<vmem>>, vector<16x256xf32>
    %c16_40 = arith.constant 16 : index
    %c0_41 = arith.constant 0 : index
    %83 = vector.load %arg9[%c16_40, %c0_41] : memref<144x256xf32, #tpu.memory_space<vmem>>, vector<16x256xf32>
    tpu.vector_store %arg9[%c16_40, %c0_41], %82 {strides = array<i32>} : memref<144x256xf32, #tpu.memory_space<vmem>>, vector<16x256xf32>,
    %c0_42 = arith.constant 0 : index
    %c113 = arith.constant 113 : index
    %84 = vector.load %arg10[%c0_42, %c113] : memref<16x512xf32, #tpu.memory_space<vmem>>, vector<16x256xf32>
    %cst_43 = arith.constant 0.000000e+00 : f32
    %85 = vector.shape_cast %20 : vector<1x256xi1> to vector<1x256xi1>
    %86 = vector.broadcast %85 : vector<1x256xi1> to vector<16x256xi1>
    %87 = vector.broadcast %cst_43 : f32 to vector<16x256xf32>
    %88 = arith.select %86, %84, %87 : vector<16x256xi1>, vector<16x256xf32>
    %c32_44 = arith.constant 32 : index
    %c0_45 = arith.constant 0 : index
    %89 = vector.load %arg9[%c32_44, %c0_45] : memref<144x256xf32, #tpu.memory_space<vmem>>, vector<16x256xf32>
    tpu.vector_store %arg9[%c32_44, %c0_45], %88 {strides = array<i32>} : memref<144x256xf32, #tpu.memory_space<vmem>>, vector<16x256xf32>,
    %c0_46 = arith.constant 0 : index
    %c127 = arith.constant 127 : index
    %90 = vector.load %arg10[%c0_46, %c127] : memref<16x512xf32, #tpu.memory_space<vmem>>, vector<16x256xf32>
    %cst_47 = arith.constant 0.000000e+00 : f32
    %91 = vector.shape_cast %18 : vector<1x256xi1> to vector<1x256xi1>
    %92 = vector.broadcast %91 : vector<1x256xi1> to vector<16x256xi1>
    %93 = vector.broadcast %cst_47 : f32 to vector<16x256xf32>
    %94 = arith.select %92, %90, %93 : vector<16x256xi1>, vector<16x256xf32>
    %c48_48 = arith.constant 48 : index
    %c0_49 = arith.constant 0 : index
    %95 = vector.load %arg9[%c48_48, %c0_49] : memref<144x256xf32, #tpu.memory_space<vmem>>, vector<16x256xf32>
    tpu.vector_store %arg9[%c48_48, %c0_49], %94 {strides = array<i32>} : memref<144x256xf32, #tpu.memory_space<vmem>>, vector<16x256xf32>,
    %c0_50 = arith.constant 0 : index
    %c128_51 = arith.constant 128 : index
    %96 = vector.load %arg10[%c0_50, %c128_51] : memref<16x512xf32, #tpu.memory_space<vmem>>, vector<16x256xf32>
    %c64_52 = arith.constant 64 : index
    %c0_53 = arith.constant 0 : index
    %97 = vector.load %arg9[%c64_52, %c0_53] : memref<144x256xf32, #tpu.memory_space<vmem>>, vector<16x256xf32>
    tpu.vector_store %arg9[%c64_52, %c0_53], %96 {strides = array<i32>} : memref<144x256xf32, #tpu.memory_space<vmem>>, vector<16x256xf32>,
    %c0_54 = arith.constant 0 : index
    %c129 = arith.constant 129 : index
    %98 = vector.load %arg10[%c0_54, %c129] : memref<16x512xf32, #tpu.memory_space<vmem>>, vector<16x256xf32>
    %cst_55 = arith.constant 0.000000e+00 : f32
    %99 = vector.shape_cast %20 : vector<1x256xi1> to vector<1x256xi1>
    %100 = vector.broadcast %99 : vector<1x256xi1> to vector<16x256xi1>
    %101 = vector.broadcast %cst_55 : f32 to vector<16x256xf32>
    %102 = arith.select %100, %98, %101 : vector<16x256xi1>, vector<16x256xf32>
    %c80_56 = arith.constant 80 : index
    %c0_57 = arith.constant 0 : index
    %103 = vector.load %arg9[%c80_56, %c0_57] : memref<144x256xf32, #tpu.memory_space<vmem>>, vector<16x256xf32>
    tpu.vector_store %arg9[%c80_56, %c0_57], %102 {strides = array<i32>} : memref<144x256xf32, #tpu.memory_space<vmem>>, vector<16x256xf32>,
    %c0_58 = arith.constant 0 : index
    %c143 = arith.constant 143 : index
    %104 = vector.load %arg10[%c0_58, %c143] : memref<16x512xf32, #tpu.memory_space<vmem>>, vector<16x256xf32>
    %cst_59 = arith.constant 0.000000e+00 : f32
    %105 = vector.shape_cast %18 : vector<1x256xi1> to vector<1x256xi1>
    %106 = vector.broadcast %105 : vector<1x256xi1> to vector<16x256xi1>
    %107 = vector.broadcast %cst_59 : f32 to vector<16x256xf32>
    %108 = arith.select %106, %104, %107 : vector<16x256xi1>, vector<16x256xf32>
    %c96_60 = arith.constant 96 : index
    %c0_61 = arith.constant 0 : index
    %109 = vector.load %arg9[%c96_60, %c0_61] : memref<144x256xf32, #tpu.memory_space<vmem>>, vector<16x256xf32>
    tpu.vector_store %arg9[%c96_60, %c0_61], %108 {strides = array<i32>} : memref<144x256xf32, #tpu.memory_space<vmem>>, vector<16x256xf32>,
    %c0_62 = arith.constant 0 : index
    %c144 = arith.constant 144 : index
    %110 = vector.load %arg10[%c0_62, %c144] : memref<16x512xf32, #tpu.memory_space<vmem>>, vector<16x256xf32>
    %c112_63 = arith.constant 112 : index
    %c0_64 = arith.constant 0 : index
    %111 = vector.load %arg9[%c112_63, %c0_64] : memref<144x256xf32, #tpu.memory_space<vmem>>, vector<16x256xf32>
    tpu.vector_store %arg9[%c112_63, %c0_64], %110 {strides = array<i32>} : memref<144x256xf32, #tpu.memory_space<vmem>>, vector<16x256xf32>,
    %c0_65 = arith.constant 0 : index
    %c145 = arith.constant 145 : index
    %112 = vector.load %arg10[%c0_65, %c145] : memref<16x512xf32, #tpu.memory_space<vmem>>, vector<16x256xf32>
    %cst_66 = arith.constant 0.000000e+00 : f32
    %113 = vector.shape_cast %20 : vector<1x256xi1> to vector<1x256xi1>
    %114 = vector.broadcast %113 : vector<1x256xi1> to vector<16x256xi1>
    %115 = vector.broadcast %cst_66 : f32 to vector<16x256xf32>
    %116 = arith.select %114, %112, %115 : vector<16x256xi1>, vector<16x256xf32>
    %c128_67 = arith.constant 128 : index
    %c0_68 = arith.constant 0 : index
    %117 = vector.load %arg9[%c128_67, %c0_68] : memref<144x256xf32, #tpu.memory_space<vmem>>, vector<16x256xf32>
    tpu.vector_store %arg9[%c128_67, %c0_68], %116 {strides = array<i32>} : memref<144x256xf32, #tpu.memory_space<vmem>>, vector<16x256xf32>,
    %c0_69 = arith.constant 0 : index
    %c0_70 = arith.constant 0 : index
    %118 = vector.load %arg4[%c0_69, %c0_70] : memref<16x144xf32, #tpu.memory_space<vmem>>, vector<16x144xf32>
    %c0_71 = arith.constant 0 : index
    %c0_72 = arith.constant 0 : index
    %119 = vector.load %arg9[%c0_71, %c0_72] : memref<144x256xf32, #tpu.memory_space<vmem>>, vector<144x256xf32>
    %cst_73 = arith.constant dense<0.000000e+00> : vector<16x256xf32>
    %120 = tpu.matmul %118, %119, %cst_73 {dimension_numbers = #tpu.dot_dimension_numbers<[1], [0], [0], [1], [0, 0, 1, 1], [], []>} : vector<16x144xf32>, vector<144x256xf32>, vector<16x256xf32> -> vector<16x256xf32>
    %c0_74 = arith.constant 0 : index
    %c0_75 = arith.constant 0 : index
    %121 = vector.load %arg5[%c0_74, %c0_75] : memref<16x1xf32, #tpu.memory_space<vmem>>, vector<16x1xf32>
    %122 = vector.broadcast %121 : vector<16x1xf32> to vector<16x256xf32>
    %123 = arith.addf %120, %122 : vector<16x256xf32>
    %cst_76 = arith.constant 0.000000e+00 : f32
    %124 = vector.broadcast %cst_76 : f32 to vector<16x256xf32>
    %125 = arith.maximumf %123, %124 : vector<16x256xf32>
    %c0_77 = arith.constant 0 : index
    %c0_78 = arith.constant 0 : index
    %126 = vector.load %arg6[%c0_77, %c0_78] : memref<10x16xf32, #tpu.memory_space<vmem>>, vector<10x16xf32>
    %cst_79 = arith.constant dense<0.000000e+00> : vector<10x256xf32>
    %127 = tpu.matmul %126, %125, %cst_79 {dimension_numbers = #tpu.dot_dimension_numbers<[1], [0], [0], [1], [0, 0, 1, 1], [], []>} : vector<10x16xf32>, vector<16x256xf32>, vector<10x256xf32> -> vector<10x256xf32>
    %c0_80 = arith.constant 0 : index
    %c0_81 = arith.constant 0 : index
    %128 = vector.load %arg7[%c0_80, %c0_81] : memref<10x1xf32, #tpu.memory_space<vmem>>, vector<10x1xf32>
    %129 = vector.broadcast %128 : vector<10x1xf32> to vector<10x256xf32>
    %130 = arith.addf %127, %129 : vector<10x256xf32>
    %131 = vector.extract_strided_slice %22 {offsets = [0, 17], sizes = [10, 256], strides = [1, 1]} : vector<16x290xf32> to vector<10x256xf32>
    %132 = arith.addf %131, %130 : vector<10x256xf32>
    %c0_82 = arith.constant 0 : index
    %c0_83 = arith.constant 0 : index
    %c0_84 = arith.constant 0 : index
    %133 = vector.load %arg8[%c0_82, %c0_83, %c0_84] : memref<1x10x256xf32, #tpu.memory_space<vmem>>, vector<1x10x256xf32>
    %134 = vector.shape_cast %133 : vector<1x10x256xf32> to vector<10x256xf32>
    %135 = vector.shape_cast %132 : vector<10x256xf32> to vector<1x10x256xf32>
    tpu.vector_store %arg8[%c0_82, %c0_83, %c0_84], %135 {strides = array<i32>} : memref<1x10x256xf32, #tpu.memory_space<vmem>>, vector<1x10x256xf32>,
    return
  }
  func.func @transform_0(%arg0: i32) -> (i32, i32, i32) {
    %c0_i32 = arith.constant 0 : i32
    %c0_i32_0 = arith.constant 0 : i32
    %c0_i32_1 = arith.constant 0 : i32
    return %arg0, %c0_i32, %c0_i32_0 : i32, i32, i32
  }
  func.func @transform_1(%arg0: i32) -> (i32, i32) {
    %c0_i32 = arith.constant 0 : i32
    %c0_i32_0 = arith.constant 0 : i32
    %c0_i32_1 = arith.constant 0 : i32
    return %c0_i32, %c0_i32_0 : i32, i32
  }
  func.func @transform_2(%arg0: i32) -> (i32, i32) {
    %c0_i32 = arith.constant 0 : i32
    %c0_i32_0 = arith.constant 0 : i32
    %c0_i32_1 = arith.constant 0 : i32
    return %c0_i32, %c0_i32_0 : i32, i32
  }
  func.func @transform_3(%arg0: i32) -> (i32, i32) {
    %c0_i32 = arith.constant 0 : i32
    %c0_i32_0 = arith.constant 0 : i32
    %c0_i32_1 = arith.constant 0 : i32
    return %c0_i32, %c0_i32_0 : i32, i32
  }
  func.func @transform_4(%arg0: i32) -> (i32, i32) {
    %c0_i32 = arith.constant 0 : i32
    %c0_i32_0 = arith.constant 0 : i32
    %c0_i32_1 = arith.constant 0 : i32
    return %c0_i32, %c0_i32_0 : i32, i32
  }
  func.func @transform_5(%arg0: i32) -> (i32, i32) {
    %c0_i32 = arith.constant 0 : i32
    %c0_i32_0 = arith.constant 0 : i32
    %c0_i32_1 = arith.constant 0 : i32
    return %c0_i32, %c0_i32_0 : i32, i32
  }
  func.func @transform_6(%arg0: i32) -> (i32, i32) {
    %c0_i32 = arith.constant 0 : i32
    %c0_i32_0 = arith.constant 0 : i32
    %c0_i32_1 = arith.constant 0 : i32
    return %c0_i32, %c0_i32_0 : i32, i32
  }
  func.func @transform_7(%arg0: i32) -> (i32, i32, i32) {
    %c0_i32 = arith.constant 0 : i32
    %c0_i32_0 = arith.constant 0 : i32
    %c0_i32_1 = arith.constant 0 : i32
    return %arg0, %c0_i32, %c0_i32_0 : i32, i32, i32
  }
}

</mosaic_0001>

<llo_original>
// kernel: task301_forward.1
$region0: #{task301_forward.1}
  #allocation0 [shape = 'u32[]', space=smem, size = 0x4, offset = 0x4, fixed_abs, tag = 'smem constant byte address 0x4 - core index']
  #allocation1 [shape = 'u32[144,128]{1,0:T(1,128)}', space=vmem, size = 0x12000, scoped, tag = 'internal scratch']
  #allocation2 [shape = 'f32[144,256]{1,0:T(8,128)}', space=vmem, size = 0x24000, scoped, tag = 'scratch operand']
  #allocation3 [shape = 'f32[16,512]{1,0:T(8,128)}', space=vmem, size = 0x8000, scoped, tag = 'scratch operand']
  %s0 = inlined_call_operand.vmem [shape: f32[2,16,290], index: 0, kind: input, shape index: {}]
  %s1 = inlined_call_operand.vmem [shape: f32[16,144], index: 1, kind: input, shape index: {}]
  %s2 = inlined_call_operand.vmem [shape: f32[16,1], index: 2, kind: input, shape index: {}]
  %s3 = inlined_call_operand.vmem [shape: f32[16,144], index: 3, kind: input, shape index: {}]
  %s4 = inlined_call_operand.vmem [shape: f32[16,1], index: 4, kind: input, shape index: {}]
  %s5 = inlined_call_operand.vmem [shape: f32[10,16], index: 5, kind: input, shape index: {}]
  %s6 = inlined_call_operand.vmem [shape: f32[10,1], index: 6, kind: input, shape index: {}]
  %s7 = inlined_call_operand.vmem [shape: f32[2,10,256], index: 7, kind: output, shape index: {}]
  %s8 = sld [smem:[#allocation0]]
  $region61: #{task301_forward.1} parent=0
    _
  %s10 = ssub.s32 1, %s8
  %s11 = scalar_select 0, %s10, %s8
  loop: start=0, step=1, limit=4
  $region2: #{task301_forward.1} parent=0 // loop_pre_header
    _
  $region3: #{task301_forward.1} parent=0 // loop_header
    %s13 = sphi 0, %s17
    %p14 = scmp.ge.s32.totalorder %s13, 4
    %s23 = sphi 0, %s25
    %s26 = sphi 0, %s23
    %s27 = sphi 0, %s26
    %s43 = sphi 0, %s27
    %s47 = sphi 0, %s47
    %s49 = sphi 0, %s47
    %s50 = sphi 0, %s49
    %s64 = sphi 0, %s50
    %s68 = sphi 0, %s68
    %s70 = sphi 0, %s68
    %s71 = sphi 0, %s70
    %s85 = sphi 0, %s71
    %s89 = sphi 0, %s89
    %s91 = sphi 0, %s89
    %s92 = sphi 0, %s91
    %s106 = sphi 0, %s92
    %s110 = sphi 0, %s110
    %s112 = sphi 0, %s110
    %s113 = sphi 0, %s112
    %s127 = sphi 0, %s113
    %s131 = sphi 0, %s131
    %s133 = sphi 0, %s131
    %s134 = sphi 0, %s133
    %s148 = sphi 0, %s134
    %s152 = sphi 0, %s152
    %s154 = sphi 0, %s152
    %s155 = sphi 0, %s154
    %s169 = sphi 0, %s155
    %s175 = sphi 0, %s177
    %s178 = sphi 0, %s175
    %s179 = sphi 0, %s178
    %s195 = sphi 0, %s179
  $region4: #{task301_forward.1} parent=0 // loop_header_branch
    %16 = sbr.rel (%p14) target = $region8
  $region5: #{task301_forward.1} parent=0 // loop_body
    %s18 = ssub.s32 %s13, 1
    %s19 = ssub.s32 %s13, 2
    %s20 = sadd.s32 %s13, 1
    %s21 = ssub.s32 %s13, %s20
    %p22 = scmp.eq.s32.totalorder %s21, 0
    %s24 = sadd.s32 %s23, 1
    %s25 = scalar_select %p22, %s23, %s24
    %p28 = pneg %p22
    %p29 = scmp.eq.s32.totalorder %s13, 1
    %p30 = por %p28, %p29
    %p31 = scmp.ne.s32.totalorder %s23, %s26
    %p32 = scmp.eq.s32.totalorder %s13, 0
    %p33 = por %p31, %p32
    %p34 = scmp.ne.s32.totalorder %s23, %s26
    %p35 = scmp.eq.s32.totalorder %s18, 1
    %p36 = por %p34, %p35
    %p37 = scmp.ne.s32.totalorder %s26, %s27
    %p38 = scmp.eq.s32.totalorder %s18, 0
    %p39 = por %p37, %p38
    %p40 = scmp.ne.s32.totalorder %s26, %s27
    %p41 = scmp.eq.s32.totalorder %s19, 1
    %p42 = por %p40, %p41
    %p44 = scmp.ne.s32.totalorder %s27, %s43
    %p45 = scmp.eq.s32.totalorder %s19, 0
    %p46 = por %p44, %p45
    %s48 = sadd.s32 %s47, 1
    %p51 = scmp.eq.s32.totalorder %s13, 1
    %p52 = scmp.ne.s32.totalorder %s47, %s49
    %p53 = scmp.eq.s32.totalorder %s13, 0
    %p54 = por %p52, %p53
    %p55 = scmp.ne.s32.totalorder %s47, %s49
    %p56 = scmp.eq.s32.totalorder %s18, 1
    %p57 = por %p55, %p56
    %p58 = scmp.ne.s32.totalorder %s49, %s50
    %p59 = scmp.eq.s32.totalorder %s18, 0
    %p60 = por %p58, %p59
    %p61 = scmp.ne.s32.totalorder %s49, %s50
    %p62 = scmp.eq.s32.totalorder %s19, 1
    %p63 = por %p61, %p62
    %p65 = scmp.ne.s32.totalorder %s50, %s64
    %p66 = scmp.eq.s32.totalorder %s19, 0
    %p67 = por %p65, %p66
    %s69 = sadd.s32 %s68, 1
    %p72 = scmp.eq.s32.totalorder %s13, 1
    %p73 = scmp.ne.s32.totalorder %s68, %s70
    %p74 = scmp.eq.s32.totalorder %s13, 0
    %p75 = por %p73, %p74
    %p76 = scmp.ne.s32.totalorder %s68, %s70
    %p77 = scmp.eq.s32.totalorder %s18, 1
    %p78 = por %p76, %p77
    %p79 = scmp.ne.s32.totalorder %s70, %s71
    %p80 = scmp.eq.s32.totalorder %s18, 0
    %p81 = por %p79, %p80
    %p82 = scmp.ne.s32.totalorder %s70, %s71
    %p83 = scmp.eq.s32.totalorder %s19, 1
    %p84 = por %p82, %p83
    %p86 = scmp.ne.s32.totalorder %s71, %s85
    %p87 = scmp.eq.s32.totalorder %s19, 0
    %p88 = por %p86, %p87
    %s90 = sadd.s32 %s89, 1
    %p93 = scmp.eq.s32.totalorder %s13, 1
    %p94 = scmp.ne.s32.totalorder %s89, %s91
    %p95 = scmp.eq.s32.totalorder %s13, 0
    %p96 = por %p94, %p95
    %p97 = scmp.ne.s32.totalorder %s89, %s91
    %p98 = scmp.eq.s32.totalorder %s18, 1
    %p99 = por %p97, %p98
    %p100 = scmp.ne.s32.totalorder %s91, %s92
    %p101 = scmp.eq.s32.totalorder %s18, 0
    %p102 = por %p100, %p101
    %p103 = scmp.ne.s32.totalorder %s91, %s92
    %p104 = scmp.eq.s32.totalorder %s19, 1
    %p105 = por %p103, %p104
    %p107 = scmp.ne.s32.totalorder %s92, %s106
    %p108 = scmp.eq.s32.totalorder %s19, 0
    %p109 = por %p107, %p108
    %s111 = sadd.s32 %s110, 1
    %p114 = scmp.eq.s32.totalorder %s13, 1
    %p115 = scmp.ne.s32.totalorder %s110, %s112
    %p116 = scmp.eq.s32.totalorder %s13, 0
    %p117 = por %p115, %p116
    %p118 = scmp.ne.s32.totalorder %s110, %s112
    %p119 = scmp.eq.s32.totalorder %s18, 1
    %p120 = por %p118, %p119
    %p121 = scmp.ne.s32.totalorder %s112, %s113
    %p122 = scmp.eq.s32.totalorder %s18, 0
    %p123 = por %p121, %p122
    %p124 = scmp.ne.s32.totalorder %s112, %s113
    %p125 = scmp.eq.s32.totalorder %s19, 1
    %p126 = por %p124, %p125
    %p128 = scmp.ne.s32.totalorder %s113, %s127
    %p129 = scmp.eq.s32.totalorder %s19, 0
    %p130 = por %p128, %p129
    %s132 = sadd.s32 %s131, 1
    %p135 = scmp.eq.s32.totalorder %s13, 1
    %p136 = scmp.ne.s32.totalorder %s131, %s133
    %p137 = scmp.eq.s32.totalorder %s13, 0
    %p138 = por %p136, %p137
    %p139 = scmp.ne.s32.totalorder %s131, %s133
    %p140 = scmp.eq.s32.totalorder %s18, 1
    %p141 = por %p139, %p140
    %p142 = scmp.ne.s32.totalorder %s133, %s134
    %p143 = scmp.eq.s32.totalorder %s18, 0
    %p144 = por %p142, %p143
    %p145 = scmp.ne.s32.totalorder %s133, %s134
    %p146 = scmp.eq.s32.totalorder %s19, 1
    %p147 = por %p145, %p146
    %p149 = scmp.ne.s32.totalorder %s134, %s148
    %p150 = scmp.eq.s32.totalorder %s19, 0
    %p151 = por %p149, %p150
    %s153 = sadd.s32 %s152, 1
    %p156 = scmp.eq.s32.totalorder %s13, 1
    %p157 = scmp.ne.s32.totalorder %s152, %s154
    %p158 = scmp.eq.s32.totalorder %s13, 0
    %p159 = por %p157, %p158
    %p160 = scmp.ne.s32.totalorder %s152, %s154
    %p161 = scmp.eq.s32.totalorder %s18, 1
    %p162 = por %p160, %p161
    %p163 = scmp.ne.s32.totalorder %s154, %s155
    %p164 = scmp.eq.s32.totalorder %s18, 0
    %p165 = por %p163, %p164
    %p166 = scmp.ne.s32.totalorder %s154, %s155
    %p167 = scmp.eq.s32.totalorder %s19, 1
    %p168 = por %p166, %p167
    %p170 = scmp.ne.s32.totalorder %s155, %s169
    %p171 = scmp.eq.s32.totalorder %s19, 0
    %p172 = por %p170, %p171
    %s173 = ssub.s32 %s13, %s20
    %p174 = scmp.eq.s32.totalorder %s173, 0
    %s176 = sadd.s32 %s175, 1
    %s177 = scalar_select %p174, %s175, %s176
    %p180 = pneg %p174
    %p181 = scmp.eq.s32.totalorder %s13, 1
    %p182 = por %p180, %p181
    %p183 = scmp.ne.s32.totalorder %s175, %s178
    %p184 = scmp.eq.s32.totalorder %s13, 0
    %p185 = por %p183, %p184
    %p186 = scmp.ne.s32.totalorder %s175, %s178
    %p187 = scmp.eq.s32.totalorder %s18, 1
    %p188 = por %p186, %p187
    %p189 = scmp.ne.s32.totalorder %s178, %s179
    %p190 = scmp.eq.s32.totalorder %s18, 0
    %p191 = por %p189, %p190
    %p192 = scmp.ne.s32.totalorder %s178, %s179
    %p193 = scmp.eq.s32.totalorder %s19, 1
    %p194 = por %p192, %p193
    %p196 = scmp.ne.s32.totalorder %s179, %s195
    %p197 = scmp.eq.s32.totalorder %s19, 0
    %p198 = por %p196, %p197
    %p199 = scmp.le.s32.totalorder 1, %s13
    %p200 = scmp.lt.s32.totalorder %s13, 3
    %p201 = pnand %p199, %p200
    %p202 = pneg %p201
    // Predicated region
    $region9: #{task301_forward.1} parent=5 // pred_check
      _
    $region10: #{task301_forward.1} parent=5 // pred_check_branch
      %204 = sbr.rel (%p201) target = $region12
    $region11: #{task301_forward.1} parent=5 // pred_region
      %s205 = ssub.s32 %s13, 1
      // Predicated region
      $region13: #{task301_forward.1} parent=11 // pred_check
        %p206 = pneg %p60
      $region14: #{task301_forward.1} parent=11 // pred_check_branch
        %208 = sbr.rel (%p206) target = $region16
      $region15: #{task301_forward.1} parent=11 // pred_region
        _
      $region16: #{task301_forward.1} parent=11 // pred_fallthru
        _
      // Predicated region
      $region17: #{task301_forward.1} parent=11 // pred_check
        %p209 = pneg %p81
      $region18: #{task301_forward.1} parent=11 // pred_check_branch
        %211 = sbr.rel (%p209) target = $region20
      $region19: #{task301_forward.1} parent=11 // pred_region
        _
      $region20: #{task301_forward.1} parent=11 // pred_fallthru
        _
      // Predicated region
      $region21: #{task301_forward.1} parent=11 // pred_check
        %p212 = pneg %p102
      $region22: #{task301_forward.1} parent=11 // pred_check_branch
        %214 = sbr.rel (%p212) target = $region24
      $region23: #{task301_forward.1} parent=11 // pred_region
        _
      $region24: #{task301_forward.1} parent=11 // pred_fallthru
        _
      // Predicated region
      $region25: #{task301_forward.1} parent=11 // pred_check
        %p215 = pneg %p123
      $region26: #{task301_forward.1} parent=11 // pred_check_branch
        %217 = sbr.rel (%p215) target = $region28
      $region27: #{task301_forward.1} parent=11 // pred_region
        _
      $region28: #{task301_forward.1} parent=11 // pred_fallthru
        _
      // Predicated region
      $region29: #{task301_forward.1} parent=11 // pred_check
        %p218 = pneg %p144
      $region30: #{task301_forward.1} parent=11 // pred_check_branch
        %220 = sbr.rel (%p218) target = $region32
      $region31: #{task301_forward.1} parent=11 // pred_region
        _
      $region32: #{task301_forward.1} parent=11 // pred_fallthru
        _
      // Predicated region
      $region33: #{task301_forward.1} parent=11 // pred_check
        %p221 = pneg %p165
      $region34: #{task301_forward.1} parent=11 // pred_check_branch
        %223 = sbr.rel (%p221) target = $region36
      $region35: #{task301_forward.1} parent=11 // pred_region
        _
      $region36: #{task301_forward.1} parent=11 // pred_fallthru
        _
    $region12: #{task301_forward.1} parent=5 // pred_fallthru
      _
    %p224 = scmp.lt.s32.totalorder %s13, 2
    // Predicated region
    $region37: #{task301_forward.1} parent=5 // pred_check
      %p225 = pneg %p224
    $region38: #{task301_forward.1} parent=5 // pred_check_branch
      %227 = sbr.rel (%p225) target = $region40
    $region39: #{task301_forward.1} parent=5 // pred_region
      // Predicated region
      $region41: #{task301_forward.1} parent=39 // pred_check
        %p228 = pneg %p33
      $region42: #{task301_forward.1} parent=39 // pred_check_branch
        %230 = sbr.rel (%p228) target = $region44
      $region43: #{task301_forward.1} parent=39 // pred_region
        %p231 = scmp.lt.s32.totalorder %s13, 1
        %s232 = scalar_select %p231, %s13, 1
        %s233 = smul.addr %s232, 6
        %s234 = smul.addr %s233, 8
        %s235 = scalar_lea.vmem %s0, %s234
      $region44: #{task301_forward.1} parent=39 // pred_fallthru
        _
    $region40: #{task301_forward.1} parent=5 // pred_fallthru
      _
    %p236 = scmp.le.s32.totalorder 1, %s13
    %p237 = scmp.lt.s32.totalorder %s13, 3
    %p238 = pnand %p236, %p237
    %p239 = pneg %p238
    // Predicated region
    $region45: #{task301_forward.1} parent=5 // pred_check
      _
    $region46: #{task301_forward.1} parent=5 // pred_check_branch
      %241 = sbr.rel (%p238) target = $region48
    $region47: #{task301_forward.1} parent=5 // pred_region
      %s242 = ssub.s32 %s13, 1
      %p243 = scmp.lt.s32.totalorder %s18, 1
      %s244 = scalar_select %p243, %s18, 1
      %s245 = smul.addr %s244, 6
      %s246 = smul.addr %s245, 8
      %s247 = scalar_lea.vmem %s0, %s246
      %p248 = pneg %p39
      %p249 = pneg %p36
      %p250 = pneg %p60
      %p251 = pneg %p57
      %p252 = pneg %p81
      %p253 = pneg %p78
      %p254 = pneg %p102
      %p255 = pneg %p99
      %p256 = pneg %p123
      %p257 = pneg %p120
      %p258 = pneg %p144
      %p259 = pneg %p141
      %p260 = pneg %p165
      %p261 = pneg %p162
      %p262 = pneg %p191
      %p263 = pneg %p188
      %p264 = scmp.lt.s32.totalorder %s18, 1
      %s265 = scalar_select %p264, %s18, 1
      %s266 = smul.addr %s265, 4
      %s267 = smul.addr %s266, 8
      %s268 = scalar_lea.vmem %s7, %s267
      %p269 = scmp.lt.s32.totalorder %s18, 1
      %s270 = scalar_select %p269, %s18, 1
      %s271 = smul.addr %s270, 6
      %s272 = smul.addr %s271, 8
      %s273 = scalar_lea.vmem %s0, %s272
      %p274 = scmp.lt.s32.totalorder %s18, 1
      %s275 = scalar_select %p274, %s18, 1
      %s276 = smul.addr %s275, 4
      %s277 = smul.addr %s276, 8
      %s278 = scalar_lea.vmem %s7, %s277
      %v279 = vlaneseq
      %v280 = vand.u32 %v279, 127
      %v281 = vadd.s32 %v280, 128
      %vm282 = vcmp.lt.s32.totalorder %v280, 0
      %v283 = vsub.s32 0, %v280
      %v284 = vsel %vm282, %v283, %v280
      %v285 = vshrl.u32 %v284, 4
      %v286 = vand.u32 %v284, 15
      %v287 = vsub.s32 0, %v286
      %v288 = vsel %vm282, %v287, %v286
      %vm289 = vcmp.lt.s32.totalorder %v281, 0
      %v290 = vsub.s32 0, %v281
      %v291 = vsel %vm289, %v290, %v281
      %v292 = vshrl.u32 %v291, 4
      %v293 = vand.u32 %v291, 15
      %v294 = vsub.s32 0, %v293
      %v295 = vsel %vm289, %v294, %v293
      %vm296 = vcmp.ne.s32.totalorder %v288, 0
      %vm297 = vcmp.ne.s32.totalorder %v295, 0
      %vm298 = vcmp.lt.s32.totalorder %v288, 0
      %vm299 = vcmp.lt.s32.totalorder %v295, 0
      %vm300 = vmand %vm298, %vm296
      %vm301 = vmand %vm299, %vm297
      %v302 = vadd.s32 %v288, 16
      %v303 = vadd.s32 %v295, 16
      %v304 = vsel %vm300, %v302, %v288
      %v305 = vsel %vm301, %v303, %v295
      %vm306 = vcmp.ne.s32.totalorder %v304, 0
      %vm307 = vcmp.ne.s32.totalorder %v305, 0
      %vm308 = vcmp.ne.s32.totalorder %v304, 15
      %vm309 = vcmp.ne.s32.totalorder %v305, 15
      %v310 = vld [vmem:[%s273] sm:$0xff]
      %v311 = vld [vmem:[%s273 + $0x8] sm:$0xff]
      %v312 = vld [vmem:[%s273 + $0x10] sm:$0xff]
      %v313 = vld [vmem:[%s273 + $0x18] sm:$0xff]
      %v314 = vld [vmem:[%s273 + $0x20] sm:$0xff]
      %v315 = vld [vmem:[%s273 + $0x28] sm:$0xff]
      %v316 = vsel %vm306, 1, 0
      %v317 = vsel %vm307, 1, 0
      %vm318 = vcmp.eq.s32.totalorder %v316, 1
      %vm319 = vcmp.eq.s32.totalorder %v317, 1
      %v320 = vsel %vm318, %v310, 0.0
      %v321 = vsel %vm319, %v311, 0.0
      %v322 = vsel %vm318, %v313, 0.0
      %v323 = vsel %vm319, %v314, 0.0
      %324 = vst [vmem:[#allocation2] sm:$0xff] %v320
      %325 = vst [vmem:[#allocation2 + $0x8] sm:$0xff] %v321
      %326 = vst [vmem:[#allocation2 + $0x10] sm:$0xff] %v322
      %327 = vst [vmem:[#allocation2 + $0x18] sm:$0xff] %v323
      %334 = vrot.lane.b32.xlu0 %v310, 127
      %v335 = vpop.permute.xlu0 %334
      %336 = vrot.lane.b32.xlu0 %v311, 127
      %v337 = vpop.permute.xlu0 %336
      %338 = vrot.lane.b32.xlu0 %v312, 127
      %v339 = vpop.permute.xlu0 %338
      %340 = vrot.lane.b32.xlu0 %v313, 127
      %v341 = vpop.permute.xlu0 %340
      %342 = vrot.lane.b32.xlu0 %v314, 127
      %v343 = vpop.permute.xlu0 %342
      %344 = vrot.lane.b32.xlu0 %v315, 127
      %v345 = vpop.permute.xlu0 %344
      %vm346 = vcmask 1039360
      %v347 = vsel %vm346, %v335, %v337
      %v348 = vsel %vm346, %v337, %v339
      %v349 = vsel %vm346, %v341, %v343
      %v350 = vsel %vm346, %v343, %v345
      %355 = vst [vmem:[#allocation2 + $0x20] sm:$0xff] %v347
      %356 = vst [vmem:[#allocation2 + $0x28] sm:$0xff] %v348
      %357 = vst [vmem:[#allocation2 + $0x30] sm:$0xff] %v349
      %358 = vst [vmem:[#allocation2 + $0x38] sm:$0xff] %v350
      %v359 = vsel %vm308, 1, 0
      %v360 = vsel %vm309, 1, 0
      %vm361 = vcmp.eq.s32.totalorder %v359, 1
      %vm362 = vcmp.eq.s32.totalorder %v360, 1
      %363 = vrot.lane.b32.xlu0 %v310, 126
      %v364 = vpop.permute.xlu0 %363
      %365 = vrot.lane.b32.xlu0 %v311, 126
      %v366 = vpop.permute.xlu0 %365
      %367 = vrot.lane.b32.xlu0 %v312, 126
      %v368 = vpop.permute.xlu0 %367
      %369 = vrot.lane.b32.xlu0 %v313, 126
      %v370 = vpop.permute.xlu0 %369
      %371 = vrot.lane.b32.xlu0 %v314, 126
      %v372 = vpop.permute.xlu0 %371
      %373 = vrot.lane.b32.xlu0 %v315, 126
      %v374 = vpop.permute.xlu0 %373
      %vm375 = vcmask 1031168
      %v376 = vsel %vm375, %v364, %v366
      %v377 = vsel %vm375, %v366, %v368
      %v378 = vsel %vm375, %v370, %v372
      %v379 = vsel %vm375, %v372, %v374
      %v384 = vsel %vm361, %v376, 0.0
      %v385 = vsel %vm362, %v377, 0.0
      %v386 = vsel %vm361, %v378, 0.0
      %v387 = vsel %vm362, %v379, 0.0
      %388 = vst [vmem:[#allocation2 + $0x40] sm:$0xff] %v384
      %389 = vst [vmem:[#allocation2 + $0x48] sm:$0xff] %v385
      %390 = vst [vmem:[#allocation2 + $0x50] sm:$0xff] %v386
      %391 = vst [vmem:[#allocation2 + $0x58] sm:$0xff] %v387
      %392 = vrot.lane.b32.xlu0 %v310, 112
      %v393 = vpop.permute.xlu0 %392
      %394 = vrot.lane.b32.xlu0 %v311, 112
      %v395 = vpop.permute.xlu0 %394
      %396 = vrot.lane.b32.xlu0 %v312, 112
      %v397 = vpop.permute.xlu0 %396
      %398 = vrot.lane.b32.xlu0 %v313, 112
      %v399 = vpop.permute.xlu0 %398
      %400 = vrot.lane.b32.xlu0 %v314, 112
      %v401 = vpop.permute.xlu0 %400
      %402 = vrot.lane.b32.xlu0 %v315, 112
      %v403 = vpop.permute.xlu0 %402
      %vm404 = vcmask 916480
      %v405 = vsel %vm404, %v393, %v395
      %v406 = vsel %vm404, %v395, %v397
      %v407 = vsel %vm404, %v399, %v401
      %v408 = vsel %vm404, %v401, %v403
      %v413 = vsel %vm318, %v405, 0.0
      %v414 = vsel %vm319, %v406, 0.0
      %v415 = vsel %vm318, %v407, 0.0
      %v416 = vsel %vm319, %v408, 0.0
      %417 = vst [vmem:[#allocation2 + $0x60] sm:$0xff] %v413
      %418 = vst [vmem:[#allocation2 + $0x68] sm:$0xff] %v414
      %419 = vst [vmem:[#allocation2 + $0x70] sm:$0xff] %v415
      %420 = vst [vmem:[#allocation2 + $0x78] sm:$0xff] %v416
      %421 = vrot.lane.b32.xlu0 %v310, 111
      %v422 = vpop.permute.xlu0 %421
      %423 = vrot.lane.b32.xlu0 %v311, 111
      %v424 = vpop.permute.xlu0 %423
      %425 = vrot.lane.b32.xlu0 %v312, 111
      %v426 = vpop.permute.xlu0 %425
      %427 = vrot.lane.b32.xlu0 %v313, 111
      %v428 = vpop.permute.xlu0 %427
      %429 = vrot.lane.b32.xlu0 %v314, 111
      %v430 = vpop.permute.xlu0 %429
      %431 = vrot.lane.b32.xlu0 %v315, 111
      %v432 = vpop.permute.xlu0 %431
      %vm433 = vcmask 908288
      %v434 = vsel %vm433, %v422, %v424
      %v435 = vsel %vm433, %v424, %v426
      %v436 = vsel %vm433, %v428, %v430
      %v437 = vsel %vm433, %v430, %v432
      %442 = vst [vmem:[#allocation2 + $0x80] sm:$0xff] %v434
      %443 = vst [vmem:[#allocation2 + $0x88] sm:$0xff] %v435
      %444 = vst [vmem:[#allocation2 + $0x90] sm:$0xff] %v436
      %445 = vst [vmem:[#allocation2 + $0x98] sm:$0xff] %v437
      %446 = vrot.lane.b32.xlu0 %v310, 110
      %v447 = vpop.permute.xlu0 %446
      %448 = vrot.lane.b32.xlu0 %v311, 110
      %v449 = vpop.permute.xlu0 %448
      %450 = vrot.lane.b32.xlu0 %v312, 110
      %v451 = vpop.permute.xlu0 %450
      %452 = vrot.lane.b32.xlu0 %v313, 110
      %v453 = vpop.permute.xlu0 %452
      %454 = vrot.lane.b32.xlu0 %v314, 110
      %v455 = vpop.permute.xlu0 %454
      %456 = vrot.lane.b32.xlu0 %v315, 110
      %v457 = vpop.permute.xlu0 %456
      %vm458 = vcmask 900096
      %v459 = vsel %vm458, %v447, %v449
      %v460 = vsel %vm458, %v449, %v451
      %v461 = vsel %vm458, %v453, %v455
      %v462 = vsel %vm458, %v455, %v457
      %v467 = vsel %vm361, %v459, 0.0
      %v468 = vsel %vm362, %v460, 0.0
      %v469 = vsel %vm361, %v461, 0.0
      %v470 = vsel %vm362, %v462, 0.0
      %471 = vst [vmem:[#allocation2 + $0xa0] sm:$0xff] %v467
      %472 = vst [vmem:[#allocation2 + $0xa8] sm:$0xff] %v468
      %473 = vst [vmem:[#allocation2 + $0xb0] sm:$0xff] %v469
      %474 = vst [vmem:[#allocation2 + $0xb8] sm:$0xff] %v470
      %475 = vrot.lane.b32.xlu0 %v310, 96
      %v476 = vpop.permute.xlu0 %475
      %477 = vrot.lane.b32.xlu0 %v311, 96
      %v478 = vpop.permute.xlu0 %477
      %479 = vrot.lane.b32.xlu0 %v312, 96
      %v480 = vpop.permute.xlu0 %479
      %481 = vrot.lane.b32.xlu0 %v313, 96
      %v482 = vpop.permute.xlu0 %481
      %483 = vrot.lane.b32.xlu0 %v314, 96
      %v484 = vpop.permute.xlu0 %483
      %485 = vrot.lane.b32.xlu0 %v315, 96
      %v486 = vpop.permute.xlu0 %485
      %vm487 = vcmask 785408
      %v488 = vsel %vm487, %v476, %v478
      %v489 = vsel %vm487, %v478, %v480
      %v490 = vsel %vm487, %v482, %v484
      %v491 = vsel %vm487, %v484, %v486
      %v496 = vsel %vm318, %v488, 0.0
      %v497 = vsel %vm319, %v489, 0.0
      %v498 = vsel %vm318, %v490, 0.0
      %v499 = vsel %vm319, %v491, 0.0
      %500 = vst [vmem:[#allocation2 + $0xc0] sm:$0xff] %v496
      %501 = vst [vmem:[#allocation2 + $0xc8] sm:$0xff] %v497
      %502 = vst [vmem:[#allocation2 + $0xd0] sm:$0xff] %v498
      %503 = vst [vmem:[#allocation2 + $0xd8] sm:$0xff] %v499
      %504 = vrot.lane.b32.xlu0 %v310, 95
      %v505 = vpop.permute.xlu0 %504
      %506 = vrot.lane.b32.xlu0 %v311, 95
      %v507 = vpop.permute.xlu0 %506
      %508 = vrot.lane.b32.xlu0 %v312, 95
      %v509 = vpop.permute.xlu0 %508
      %510 = vrot.lane.b32.xlu0 %v313, 95
      %v511 = vpop.permute.xlu0 %510
      %512 = vrot.lane.b32.xlu0 %v314, 95
      %v513 = vpop.permute.xlu0 %512
      %514 = vrot.lane.b32.xlu0 %v315, 95
      %v515 = vpop.permute.xlu0 %514
      %vm516 = vcmask 777216
      %v517 = vsel %vm516, %v505, %v507
      %v518 = vsel %vm516, %v507, %v509
      %v519 = vsel %vm516, %v511, %v513
      %v520 = vsel %vm516, %v513, %v515
      %525 = vst [vmem:[#allocation2 + $0xe0] sm:$0xff] %v517
      %526 = vst [vmem:[#allocation2 + $0xe8] sm:$0xff] %v518
      %527 = vst [vmem:[#allocation2 + $0xf0] sm:$0xff] %v519
      %528 = vst [vmem:[#allocation2 + $0xf8] sm:$0xff] %v520
      %529 = vrot.lane.b32.xlu0 %v310, 94
      %v530 = vpop.permute.xlu0 %529
      %531 = vrot.lane.b32.xlu0 %v311, 94
      %v532 = vpop.permute.xlu0 %531
      %533 = vrot.lane.b32.xlu0 %v312, 94
      %v534 = vpop.permute.xlu0 %533
      %535 = vrot.lane.b32.xlu0 %v313, 94
      %v536 = vpop.permute.xlu0 %535
      %537 = vrot.lane.b32.xlu0 %v314, 94
      %v538 = vpop.permute.xlu0 %537
      %539 = vrot.lane.b32.xlu0 %v315, 94
      %v540 = vpop.permute.xlu0 %539
      %vm541 = vcmask 769024
      %v542 = vsel %vm541, %v530, %v532
      %v543 = vsel %vm541, %v532, %v534
      %v544 = vsel %vm541, %v536, %v538
      %v545 = vsel %vm541, %v538, %v540
      %v550 = vsel %vm361, %v542, 0.0
      %v551 = vsel %vm362, %v543, 0.0
      %v552 = vsel %vm361, %v544, 0.0
      %v553 = vsel %vm362, %v545, 0.0
      %554 = vst [vmem:[#allocation2 + $0x100] sm:$0xff] %v550
      %555 = vst [vmem:[#allocation2 + $0x108] sm:$0xff] %v551
      %556 = vst [vmem:[#allocation2 + $0x110] sm:$0xff] %v552
      %557 = vst [vmem:[#allocation2 + $0x118] sm:$0xff] %v553
      %v558 = vld [vmem:[%s1] sm:$0xff]
      %v559 = vld [vmem:[%s1 + $0x8] sm:$0xff]
      %v560 = vld [vmem:[%s1 + $0x10] sm:$0xff]
      %v561 = vld [vmem:[%s1 + $0x18] sm:$0xff]
      %v562 = vld [vmem:[#allocation2] sm:$0xff]
      %v563 = vld [vmem:[#allocation2 + $0x8] sm:$0xff]
      %v564 = vld [vmem:[#allocation2 + $0x10] sm:$0xff]
      %v565 = vld [vmem:[#allocation2 + $0x18] sm:$0xff]
      %v566 = vld [vmem:[#allocation2 + $0x20] sm:$0xff]
      %v567 = vld [vmem:[#allocation2 + $0x28] sm:$0xff]
      %v568 = vld [vmem:[#allocation2 + $0x30] sm:$0xff]
      %v569 = vld [vmem:[#allocation2 + $0x38] sm:$0xff]
      %v570 = vld [vmem:[#allocation2 + $0x40] sm:$0xff]
      %v571 = vld [vmem:[#allocation2 + $0x48] sm:$0xff]
      %v572 = vld [vmem:[#allocation2 + $0x50] sm:$0xff]
      %v573 = vld [vmem:[#allocation2 + $0x58] sm:$0xff]
      %v574 = vld [vmem:[#allocation2 + $0x60] sm:$0xff]
      %v575 = vld [vmem:[#allocation2 + $0x68] sm:$0xff]
      %v576 = vld [vmem:[#allocation2 + $0x70] sm:$0xff]
      %v577 = vld [vmem:[#allocation2 + $0x78] sm:$0xff]
      %v578 = vld [vmem:[#allocation2 + $0x80] sm:$0xff]
      %v579 = vld [vmem:[#allocation2 + $0x88] sm:$0xff]
      %v580 = vld [vmem:[#allocation2 + $0x90] sm:$0xff]
      %v581 = vld [vmem:[#allocation2 + $0x98] sm:$0xff]
      %v582 = vld [vmem:[#allocation2 + $0xa0] sm:$0xff]
      %v583 = vld [vmem:[#allocation2 + $0xa8] sm:$0xff]
      %v584 = vld [vmem:[#allocation2 + $0xb0] sm:$0xff]
      %v585 = vld [vmem:[#allocation2 + $0xb8] sm:$0xff]
      %v586 = vld [vmem:[#allocation2 + $0xc0] sm:$0xff]
      %v587 = vld [vmem:[#allocation2 + $0xc8] sm:$0xff]
      %v588 = vld [vmem:[#allocation2 + $0xd0] sm:$0xff]
      %v589 = vld [vmem:[#allocation2 + $0xd8] sm:$0xff]
      %v590 = vld [vmem:[#allocation2 + $0xe0] sm:$0xff]
      %v591 = vld [vmem:[#allocation2 + $0xe8] sm:$0xff]
      %v592 = vld [vmem:[#allocation2 + $0xf0] sm:$0xff]
      %v593 = vld [vmem:[#allocation2 + $0xf8] sm:$0xff]
      %v594 = vld [vmem:[#allocation2 + $0x100] sm:$0xff]
      %v595 = vld [vmem:[#allocation2 + $0x108] sm:$0xff]
      %v596 = vld [vmem:[#allocation2 + $0x110] sm:$0xff]
      %v597 = vld [vmem:[#allocation2 + $0x118] sm:$0xff]
      %v598 = vld [vmem:[%s2] sm:$0xff]
      %v599 = vld [vmem:[%s2 + $0x8] sm:$0xff]
      %601 = vset.pattern.permute.xlu0 0
      %602 = vperm.xlu0 %601, %v598
      %v603 = vpop.permute.xlu0 %602
      %606 = vset.pattern.permute.xlu0 0
      %607 = vperm.xlu0 %606, %v599
      %v608 = vpop.permute.xlu0 %607
      %vm610 = vcmask 130048
      %v612 = vsel %vm610, %v559, 0
      %v615 = vsel %vm610, %v561, 0
      %617 = vmatprep.subr.mxu0 %v593
      %618 = vmatpush1.msra.mxu0 %v592
      %619 = vmatprep.subr.mxu0 %v591
      %620 = vmatpush1.msra.mxu0 %v590
      %621 = vmatprep.subr.mxu0 %v589
      %622 = vmatpush1.msra.mxu0 %v588
      %623 = vmatprep.subr.mxu0 %v587
      %624 = vmatpush1.msra.mxu0 %v586
      %625 = vmatprep.subr.mxu0 %v585
      %626 = vmatpush1.msra.mxu0 %v584
      %627 = vmatprep.subr.mxu0 %v583
      %628 = vmatpush1.msra.mxu0 %v582
      %629 = vmatprep.subr.mxu0 %v581
      %630 = vmatpush1.msra.mxu0 %v580
      %631 = vmatprep.subr.mxu0 %v579
      %632 = vmatpush1.msra.mxu0 %v578
      %633 = vmatprep.subr.mxu0 %v577
      %634 = vmatpush1.msra.mxu0 %v576
      %635 = vmatprep.subr.mxu0 %v575
      %636 = vmatpush1.msra.mxu0 %v574
      %637 = vmatprep.subr.mxu0 %v573
      %638 = vmatpush1.msra.mxu0 %v572
      %639 = vmatprep.subr.mxu0 %v571
      %640 = vmatpush1.msra.mxu0 %v570
      %641 = vmatprep.subr.mxu0 %v569
      %642 = vmatpush1.msra.mxu0 %v568
      %643 = vmatprep.subr.mxu0 %v567
      %644 = vmatpush1.msra.mxu0 %v566
      %645 = vmatprep.subr.mxu0 %v565
      %646 = vmatpush1.msra.mxu0 %v564
      %647 = vmatprep.subr.mxu0 %v563
      %648 = vmatpush1.msra.mxu0 %v562
      %649 = vmatprep.subr.mxu0 0.0
      %650 = vmatpush2.msra.mxu0 0.0
      %651 = vmatprep.subr.mxu0 0.0
      %652 = vmatpush2.msra.mxu0 0.0
      %653 = vmatprep.subr.mxu0 0.0
      %654 = vmatpush2.msra.mxu0 0.0
      %655 = vmatprep.subr.mxu0 0.0
      %656 = vmatpush2.msra.mxu0 0.0
      %657 = vmatprep.subr.mxu0 0.0
      %658 = vmatpush2.msra.mxu0 0.0
      %659 = vmatprep.subr.mxu0 0.0
      %660 = vmatpush2.msra.mxu0 0.0
      %661 = vmatprep.subr.mxu0 0.0
      %662 = vmatpush2.msra.mxu0 0.0
      %663 = vmatprep.subr.mxu0 0.0
      %664 = vmatpush2.msra.mxu0 0.0
      %665 = vmatprep.subr.mxu0 0.0
      %666 = vmatpush2.msra.mxu0 0.0
      %667 = vmatprep.subr.mxu0 0.0
      %668 = vmatpush2.msra.mxu0 0.0
      %669 = vmatprep.subr.mxu0 0.0
      %670 = vmatpush2.msra.mxu0 0.0
      %671 = vmatprep.subr.mxu0 0.0
      %672 = vmatpush2.msra.mxu0 0.0
      %673 = vmatprep.subr.mxu0 0.0
      %674 = vmatpush2.msra.mxu0 0.0
      %675 = vmatprep.subr.mxu0 0.0
      %676 = vmatpush2.msra.mxu0 0.0
      %677 = vmatprep.subr.mxu0 %v597
      %678 = vmatpush2.msra.mxu0 %v596
      %679 = vmatprep.subr.mxu0 %v595
      %680 = vmatpush2.msra.mxu0 %v594
      %681 = vmatprep.mubr.f32.mxu0 %v612
      %682 = vmatmul.mubr.f32.gmra.mxu0 %v558
      %v683 = vpop.f32.mrf.mxu0
      %v684 = vadd.f32 %v603, %v683
      %v685 = vpop.f32.mrf.mxu0
      %v686 = vadd.f32 %v603, %v685
      %687 = vmatprep.mubr.f32.mxu0 %v615
      %688 = vmatmul.mubr.f32.gmra.mxu0 %v560
      %v689 = vpop.f32.mrf.mxu0
      %v690 = vadd.f32 %v608, %v689
      %v691 = vpop.f32.mrf.mxu0
      %v692 = vadd.f32 %v608, %v691
      %693 = vdwg.mxu0
      %v694 = vmax.f32 %v684, 0.0
      %v695 = vmax.f32 %v686, 0.0
      %v696 = vmax.f32 %v690, 0.0
      %v697 = vmax.f32 %v692, 0.0
      %698 = vst [vmem:[#allocation3] sm:$0xff] 0.0
      %699 = vst [vmem:[#allocation3 + $0x8] sm:$0xff] 0.0
      %700 = vst [vmem:[#allocation3 + $0x10] sm:$0xff] 0.0
      %701 = vst [vmem:[#allocation3 + $0x18] sm:$0xff] 0.0
      %702 = vst [vmem:[#allocation3 + $0x20] sm:$0xff] 0.0
      %703 = vst [vmem:[#allocation3 + $0x28] sm:$0xff] 0.0
      %704 = vst [vmem:[#allocation3 + $0x30] sm:$0xff] 0.0
      %705 = vst [vmem:[#allocation3 + $0x38] sm:$0xff] 0.0
      %706 = vst [vmem:[#allocation3 + $0x8] sm:$0xff] %v694
      %707 = vst [vmem:[#allocation3 + $0x10] sm:$0xff] %v695
      %708 = vst [vmem:[#allocation3 + $0x28] sm:$0xff] %v696
      %709 = vst [vmem:[#allocation3 + $0x30] sm:$0xff] %v697
      %v710 = vld [vmem:[#allocation3] sm:$0xff]
      %v711 = vld [vmem:[#allocation3 + $0x8] sm:$0xff]
      %v712 = vld [vmem:[#allocation3 + $0x10] sm:$0xff]
      %v713 = vld [vmem:[#allocation3 + $0x20] sm:$0xff]
      %v714 = vld [vmem:[#allocation3 + $0x28] sm:$0xff]
      %v715 = vld [vmem:[#allocation3 + $0x30] sm:$0xff]
      %722 = vrot.lane.b32.xlu0 %v710, 17
      %v723 = vpop.permute.xlu0 %722
      %724 = vrot.lane.b32.xlu0 %v711, 17
      %v725 = vpop.permute.xlu0 %724
      %726 = vrot.lane.b32.xlu0 %v712, 17
      %v727 = vpop.permute.xlu0 %726
      %728 = vrot.lane.b32.xlu0 %v713, 17
      %v729 = vpop.permute.xlu0 %728
      %730 = vrot.lane.b32.xlu0 %v714, 17
      %v731 = vpop.permute.xlu0 %730
      %732 = vrot.lane.b32.xlu0 %v715, 17
      %v733 = vpop.permute.xlu0 %732
      %vm734 = vcmask 138240
      %v735 = vsel %vm734, %v723, %v725
      %v736 = vsel %vm734, %v725, %v727
      %v737 = vsel %vm734, %v729, %v731
      %v738 = vsel %vm734, %v731, %v733
      %v743 = vsel %vm318, %v735, 0.0
      %v744 = vsel %vm319, %v736, 0.0
      %v745 = vsel %vm318, %v737, 0.0
      %v746 = vsel %vm319, %v738, 0.0
      %747 = vst [vmem:[#allocation2] sm:$0xff] %v743
      %748 = vst [vmem:[#allocation2 + $0x8] sm:$0xff] %v744
      %749 = vst [vmem:[#allocation2 + $0x10] sm:$0xff] %v745
      %750 = vst [vmem:[#allocation2 + $0x18] sm:$0xff] %v746
      %v751 = vld [vmem:[#allocation3] sm:$0xff]
      %v752 = vld [vmem:[#allocation3 + $0x8] sm:$0xff]
      %v753 = vld [vmem:[#allocation3 + $0x10] sm:$0xff]
      %v754 = vld [vmem:[#allocation3 + $0x20] sm:$0xff]
      %v755 = vld [vmem:[#allocation3 + $0x28] sm:$0xff]
      %v756 = vld [vmem:[#allocation3 + $0x30] sm:$0xff]
      %763 = vrot.lane.b32.xlu0 %v751, 16
      %v764 = vpop.permute.xlu0 %763
      %765 = vrot.lane.b32.xlu0 %v752, 16
      %v766 = vpop.permute.xlu0 %765
      %767 = vrot.lane.b32.xlu0 %v753, 16
      %v768 = vpop.permute.xlu0 %767
      %769 = vrot.lane.b32.xlu0 %v754, 16
      %v770 = vpop.permute.xlu0 %769
      %771 = vrot.lane.b32.xlu0 %v755, 16
      %v772 = vpop.permute.xlu0 %771
      %773 = vrot.lane.b32.xlu0 %v756, 16
      %v774 = vpop.permute.xlu0 %773
      %v775 = vsel %vm610, %v764, %v766
      %v776 = vsel %vm610, %v766, %v768
      %v777 = vsel %vm610, %v770, %v772
      %v778 = vsel %vm610, %v772, %v774
      %783 = vst [vmem:[#allocation2 + $0x20] sm:$0xff] %v775
      %784 = vst [vmem:[#allocation2 + $0x28] sm:$0xff] %v776
      %785 = vst [vmem:[#allocation2 + $0x30] sm:$0xff] %v777
      %786 = vst [vmem:[#allocation2 + $0x38] sm:$0xff] %v778
      %v787 = vld [vmem:[#allocation3] sm:$0xff]
      %v788 = vld [vmem:[#allocation3 + $0x8] sm:$0xff]
      %v789 = vld [vmem:[#allocation3 + $0x10] sm:$0xff]
      %v790 = vld [vmem:[#allocation3 + $0x20] sm:$0xff]
      %v791 = vld [vmem:[#allocation3 + $0x28] sm:$0xff]
      %v792 = vld [vmem:[#allocation3 + $0x30] sm:$0xff]
      %799 = vrot.lane.b32.xlu0 %v787, 15
      %v800 = vpop.permute.xlu0 %799
      %801 = vrot.lane.b32.xlu0 %v788, 15
      %v802 = vpop.permute.xlu0 %801
      %803 = vrot.lane.b32.xlu0 %v789, 15
      %v804 = vpop.permute.xlu0 %803
      %805 = vrot.lane.b32.xlu0 %v790, 15
      %v806 = vpop.permute.xlu0 %805
      %807 = vrot.lane.b32.xlu0 %v791, 15
      %v808 = vpop.permute.xlu0 %807
      %809 = vrot.lane.b32.xlu0 %v792, 15
      %v810 = vpop.permute.xlu0 %809
      %vm811 = vcmask 121856
      %v812 = vsel %vm811, %v800, %v802
      %v813 = vsel %vm811, %v802, %v804
      %v814 = vsel %vm811, %v806, %v808
      %v815 = vsel %vm811, %v808, %v810
      %v820 = vsel %vm361, %v812, 0.0
      %v821 = vsel %vm362, %v813, 0.0
      %v822 = vsel %vm361, %v814, 0.0
      %v823 = vsel %vm362, %v815, 0.0
      %824 = vst [vmem:[#allocation2 + $0x40] sm:$0xff] %v820
      %825 = vst [vmem:[#allocation2 + $0x48] sm:$0xff] %v821
      %826 = vst [vmem:[#allocation2 + $0x50] sm:$0xff] %v822
      %827 = vst [vmem:[#allocation2 + $0x58] sm:$0xff] %v823
      %v828 = vld [vmem:[#allocation3] sm:$0xff]
      %v829 = vld [vmem:[#allocation3 + $0x8] sm:$0xff]
      %v830 = vld [vmem:[#allocation3 + $0x10] sm:$0xff]
      %v831 = vld [vmem:[#allocation3 + $0x20] sm:$0xff]
      %v832 = vld [vmem:[#allocation3 + $0x28] sm:$0xff]
      %v833 = vld [vmem:[#allocation3 + $0x30] sm:$0xff]
      %840 = vrot.lane.b32.xlu0 %v828, 1
      %v841 = vpop.permute.xlu0 %840
      %842 = vrot.lane.b32.xlu0 %v829, 1
      %v843 = vpop.permute.xlu0 %842
      %844 = vrot.lane.b32.xlu0 %v830, 1
      %v845 = vpop.permute.xlu0 %844
      %846 = vrot.lane.b32.xlu0 %v831, 1
      %v847 = vpop.permute.xlu0 %846
      %848 = vrot.lane.b32.xlu0 %v832, 1
      %v849 = vpop.permute.xlu0 %848
      %850 = vrot.lane.b32.xlu0 %v833, 1
      %v851 = vpop.permute.xlu0 %850
      %vm852 = vcmask 7168
      %v853 = vsel %vm852, %v841, %v843
      %v854 = vsel %vm852, %v843, %v845
      %v855 = vsel %vm852, %v847, %v849
      %v856 = vsel %vm852, %v849, %v851
      %v861 = vsel %vm318, %v853, 0.0
      %v862 = vsel %vm319, %v854, 0.0
      %v863 = vsel %vm318, %v855, 0.0
      %v864 = vsel %vm319, %v856, 0.0
      %865 = vst [vmem:[#allocation2 + $0x60] sm:$0xff] %v861
      %866 = vst [vmem:[#allocation2 + $0x68] sm:$0xff] %v862
      %867 = vst [vmem:[#allocation2 + $0x70] sm:$0xff] %v863
      %868 = vst [vmem:[#allocation2 + $0x78] sm:$0xff] %v864
      %v869 = vld [vmem:[#allocation3 + $0x8] sm:$0xff]
      %v870 = vld [vmem:[#allocation3 + $0x10] sm:$0xff]
      %v871 = vld [vmem:[#allocation3 + $0x28] sm:$0xff]
      %v872 = vld [vmem:[#allocation3 + $0x30] sm:$0xff]
      %873 = vst [vmem:[#allocation2 + $0x80] sm:$0xff] %v869
      %874 = vst [vmem:[#allocation2 + $0x88] sm:$0xff] %v870
      %875 = vst [vmem:[#allocation2 + $0x90] sm:$0xff] %v871
      %876 = vst [vmem:[#allocation2 + $0x98] sm:$0xff] %v872
      %v877 = vld [vmem:[#allocation3 + $0x8] sm:$0xff]
      %v878 = vld [vmem:[#allocation3 + $0x10] sm:$0xff]
      %v879 = vld [vmem:[#allocation3 + $0x18] sm:$0xff]
      %v880 = vld [vmem:[#allocation3 + $0x28] sm:$0xff]
      %v881 = vld [vmem:[#allocation3 + $0x30] sm:$0xff]
      %v882 = vld [vmem:[#allocation3 + $0x38] sm:$0xff]
      %889 = vrot.lane.b32.xlu0 %v877, 127
      %v890 = vpop.permute.xlu0 %889
      %891 = vrot.lane.b32.xlu0 %v878, 127
      %v892 = vpop.permute.xlu0 %891
      %893 = vrot.lane.b32.xlu0 %v879, 127
      %v894 = vpop.permute.xlu0 %893
      %895 = vrot.lane.b32.xlu0 %v880, 127
      %v896 = vpop.permute.xlu0 %895
      %897 = vrot.lane.b32.xlu0 %v881, 127
      %v898 = vpop.permute.xlu0 %897
      %899 = vrot.lane.b32.xlu0 %v882, 127
      %v900 = vpop.permute.xlu0 %899
      %v901 = vsel %vm346, %v890, %v892
      %v902 = vsel %vm346, %v892, %v894
      %v903 = vsel %vm346, %v896, %v898
      %v904 = vsel %vm346, %v898, %v900
      %v909 = vsel %vm361, %v901, 0.0
      %v910 = vsel %vm362, %v902, 0.0
      %v911 = vsel %vm361, %v903, 0.0
      %v912 = vsel %vm362, %v904, 0.0
      %913 = vst [vmem:[#allocation2 + $0xa0] sm:$0xff] %v909
      %914 = vst [vmem:[#allocation2 + $0xa8] sm:$0xff] %v910
      %915 = vst [vmem:[#allocation2 + $0xb0] sm:$0xff] %v911
      %916 = vst [vmem:[#allocation2 + $0xb8] sm:$0xff] %v912
      %v917 = vld [vmem:[#allocation3 + $0x8] sm:$0xff]
      %v918 = vld [vmem:[#allocation3 + $0x10] sm:$0xff]
      %v919 = vld [vmem:[#allocation3 + $0x18] sm:$0xff]
      %v920 = vld [vmem:[#allocation3 + $0x28] sm:$0xff]
      %v921 = vld [vmem:[#allocation3 + $0x30] sm:$0xff]
      %v922 = vld [vmem:[#allocation3 + $0x38] sm:$0xff]
      %929 = vrot.lane.b32.xlu0 %v917, 113
      %v930 = vpop.permute.xlu0 %929
      %931 = vrot.lane.b32.xlu0 %v918, 113
      %v932 = vpop.permute.xlu0 %931
      %933 = vrot.lane.b32.xlu0 %v919, 113
      %v934 = vpop.permute.xlu0 %933
      %935 = vrot.lane.b32.xlu0 %v920, 113
      %v936 = vpop.permute.xlu0 %935
      %937 = vrot.lane.b32.xlu0 %v921, 113
      %v938 = vpop.permute.xlu0 %937
      %939 = vrot.lane.b32.xlu0 %v922, 113
      %v940 = vpop.permute.xlu0 %939
      %vm941 = vcmask 924672
      %v942 = vsel %vm941, %v930, %v932
      %v943 = vsel %vm941, %v932, %v934
      %v944 = vsel %vm941, %v936, %v938
      %v945 = vsel %vm941, %v938, %v940
      %v950 = vsel %vm318, %v942, 0.0
      %v951 = vsel %vm319, %v943, 0.0
      %v952 = vsel %vm318, %v944, 0.0
      %v953 = vsel %vm319, %v945, 0.0
      %954 = vst [vmem:[#allocation2 + $0xc0] sm:$0xff] %v950
      %955 = vst [vmem:[#allocation2 + $0xc8] sm:$0xff] %v951
      %956 = vst [vmem:[#allocation2 + $0xd0] sm:$0xff] %v952
      %957 = vst [vmem:[#allocation2 + $0xd8] sm:$0xff] %v953
      %v958 = vld [vmem:[#allocation3 + $0x8] sm:$0xff]
      %v959 = vld [vmem:[#allocation3 + $0x10] sm:$0xff]
      %v960 = vld [vmem:[#allocation3 + $0x18] sm:$0xff]
      %v961 = vld [vmem:[#allocation3 + $0x28] sm:$0xff]
      %v962 = vld [vmem:[#allocation3 + $0x30] sm:$0xff]
      %v963 = vld [vmem:[#allocation3 + $0x38] sm:$0xff]
      %970 = vrot.lane.b32.xlu0 %v958, 112
      %v971 = vpop.permute.xlu0 %970
      %972 = vrot.lane.b32.xlu0 %v959, 112
      %v973 = vpop.permute.xlu0 %972
      %974 = vrot.lane.b32.xlu0 %v960, 112
      %v975 = vpop.permute.xlu0 %974
      %976 = vrot.lane.b32.xlu0 %v961, 112
      %v977 = vpop.permute.xlu0 %976
      %978 = vrot.lane.b32.xlu0 %v962, 112
      %v979 = vpop.permute.xlu0 %978
      %980 = vrot.lane.b32.xlu0 %v963, 112
      %v981 = vpop.permute.xlu0 %980
      %v982 = vsel %vm404, %v971, %v973
      %v983 = vsel %vm404, %v973, %v975
      %v984 = vsel %vm404, %v977, %v979
      %v985 = vsel %vm404, %v979, %v981
      %990 = vst [vmem:[#allocation2 + $0xe0] sm:$0xff] %v982
      %991 = vst [vmem:[#allocation2 + $0xe8] sm:$0xff] %v983
      %992 = vst [vmem:[#allocation2 + $0xf0] sm:$0xff] %v984
      %993 = vst [vmem:[#allocation2 + $0xf8] sm:$0xff] %v985
      %v994 = vld [vmem:[#allocation3 + $0x8] sm:$0xff]
      %v995 = vld [vmem:[#allocation3 + $0x10] sm:$0xff]
      %v996 = vld [vmem:[#allocation3 + $0x18] sm:$0xff]
      %v997 = vld [vmem:[#allocation3 + $0x28] sm:$0xff]
      %v998 = vld [vmem:[#allocation3 + $0x30] sm:$0xff]
      %v999 = vld [vmem:[#allocation3 + $0x38] sm:$0xff]
      %1006 = vrot.lane.b32.xlu0 %v994, 111
      %v1007 = vpop.permute.xlu0 %1006
      %1008 = vrot.lane.b32.xlu0 %v995, 111
      %v1009 = vpop.permute.xlu0 %1008
      %1010 = vrot.lane.b32.xlu0 %v996, 111
      %v1011 = vpop.permute.xlu0 %1010
      %1012 = vrot.lane.b32.xlu0 %v997, 111
      %v1013 = vpop.permute.xlu0 %1012
      %1014 = vrot.lane.b32.xlu0 %v998, 111
      %v1015 = vpop.permute.xlu0 %1014
      %1016 = vrot.lane.b32.xlu0 %v999, 111
      %v1017 = vpop.permute.xlu0 %1016
      %v1018 = vsel %vm433, %v1007, %v1009
      %v1019 = vsel %vm433, %v1009, %v1011
      %v1020 = vsel %vm433, %v1013, %v1015
      %v1021 = vsel %vm433, %v1015, %v1017
      %v1026 = vsel %vm361, %v1018, 0.0
      %v1027 = vsel %vm362, %v1019, 0.0
      %v1028 = vsel %vm361, %v1020, 0.0
      %v1029 = vsel %vm362, %v1021, 0.0
      %1030 = vst [vmem:[#allocation2 + $0x100] sm:$0xff] %v1026
      %1031 = vst [vmem:[#allocation2 + $0x108] sm:$0xff] %v1027
      %1032 = vst [vmem:[#allocation2 + $0x110] sm:$0xff] %v1028
      %1033 = vst [vmem:[#allocation2 + $0x118] sm:$0xff] %v1029
      %v1034 = vld [vmem:[%s3] sm:$0xff]
      %v1035 = vld [vmem:[%s3 + $0x8] sm:$0xff]
      %v1036 = vld [vmem:[%s3 + $0x10] sm:$0xff]
      %v1037 = vld [vmem:[%s3 + $0x18] sm:$0xff]
      %v1038 = vld [vmem:[#allocation2] sm:$0xff]
      %v1039 = vld [vmem:[#allocation2 + $0x8] sm:$0xff]
      %v1040 = vld [vmem:[#allocation2 + $0x10] sm:$0xff]
      %v1041 = vld [vmem:[#allocation2 + $0x18] sm:$0xff]
      %v1042 = vld [vmem:[#allocation2 + $0x20] sm:$0xff]
      %v1043 = vld [vmem:[#allocation2 + $0x28] sm:$0xff]
      %v1044 = vld [vmem:[#allocation2 + $0x30] sm:$0xff]
      %v1045 = vld [vmem:[#allocation2 + $0x38] sm:$0xff]
      %v1046 = vld [vmem:[#allocation2 + $0x40] sm:$0xff]
      %v1047 = vld [vmem:[#allocation2 + $0x48] sm:$0xff]
      %v1048 = vld [vmem:[#allocation2 + $0x50] sm:$0xff]
      %v1049 = vld [vmem:[#allocation2 + $0x58] sm:$0xff]
      %v1050 = vld [vmem:[#allocation2 + $0x60] sm:$0xff]
      %v1051 = vld [vmem:[#allocation2 + $0x68] sm:$0xff]
      %v1052 = vld [vmem:[#allocation2 + $0x70] sm:$0xff]
      %v1053 = vld [vmem:[#allocation2 + $0x78] sm:$0xff]
      %v1054 = vld [vmem:[#allocation2 + $0x80] sm:$0xff]
      %v1055 = vld [vmem:[#allocation2 + $0x88] sm:$0xff]
      %v1056 = vld [vmem:[#allocation2 + $0x90] sm:$0xff]
      %v1057 = vld [vmem:[#allocation2 + $0x98] sm:$0xff]
      %v1058 = vld [vmem:[#allocation2 + $0xa0] sm:$0xff]
      %v1059 = vld [vmem:[#allocation2 + $0xa8] sm:$0xff]
      %v1060 = vld [vmem:[#allocation2 + $0xb0] sm:$0xff]
      %v1061 = vld [vmem:[#allocation2 + $0xb8] sm:$0xff]
      %v1062 = vld [vmem:[#allocation2 + $0xc0] sm:$0xff]
      %v1063 = vld [vmem:[#allocation2 + $0xc8] sm:$0xff]
      %v1064 = vld [vmem:[#allocation2 + $0xd0] sm:$0xff]
      %v1065 = vld [vmem:[#allocation2 + $0xd8] sm:$0xff]
      %v1066 = vld [vmem:[#allocation2 + $0xe0] sm:$0xff]
      %v1067 = vld [vmem:[#allocation2 + $0xe8] sm:$0xff]
      %v1068 = vld [vmem:[#allocation2 + $0xf0] sm:$0xff]
      %v1069 = vld [vmem:[#allocation2 + $0xf8] sm:$0xff]
      %v1070 = vld [vmem:[#allocation2 + $0x100] sm:$0xff]
      %v1071 = vld [vmem:[#allocation2 + $0x108] sm:$0xff]
      %v1072 = vld [vmem:[#allocation2 + $0x110] sm:$0xff]
      %v1073 = vld [vmem:[#allocation2 + $0x118] sm:$0xff]
      %v1074 = vld [vmem:[%s4] sm:$0xff]
      %v1075 = vld [vmem:[%s4 + $0x8] sm:$0xff]
      %1077 = vset.pattern.permute.xlu0 0
      %1078 = vperm.xlu0 %1077, %v1074
      %v1079 = vpop.permute.xlu0 %1078
      %1082 = vset.pattern.permute.xlu0 0
      %1083 = vperm.xlu0 %1082, %v1075
      %v1084 = vpop.permute.xlu0 %1083
      %v1087 = vsel %vm610, %v1035, 0
      %v1090 = vsel %vm610, %v1037, 0
      %1092 = vmatprep.subr.mxu0 %v1069
      %1093 = vmatpush1.msra.mxu0 %v1068
      %1094 = vmatprep.subr.mxu0 %v1067
      %1095 = vmatpush1.msra.mxu0 %v1066
      %1096 = vmatprep.subr.mxu0 %v1065
      %1097 = vmatpush1.msra.mxu0 %v1064
      %1098 = vmatprep.subr.mxu0 %v1063
      %1099 = vmatpush1.msra.mxu0 %v1062
      %1100 = vmatprep.subr.mxu0 %v1061
      %1101 = vmatpush1.msra.mxu0 %v1060
      %1102 = vmatprep.subr.mxu0 %v1059
      %1103 = vmatpush1.msra.mxu0 %v1058
      %1104 = vmatprep.subr.mxu0 %v1057
      %1105 = vmatpush1.msra.mxu0 %v1056
      %1106 = vmatprep.subr.mxu0 %v1055
      %1107 = vmatpush1.msra.mxu0 %v1054
      %1108 = vmatprep.subr.mxu0 %v1053
      %1109 = vmatpush1.msra.mxu0 %v1052
      %1110 = vmatprep.subr.mxu0 %v1051
      %1111 = vmatpush1.msra.mxu0 %v1050
      %1112 = vmatprep.subr.mxu0 %v1049
      %1113 = vmatpush1.msra.mxu0 %v1048
      %1114 = vmatprep.subr.mxu0 %v1047
      %1115 = vmatpush1.msra.mxu0 %v1046
      %1116 = vmatprep.subr.mxu0 %v1045
      %1117 = vmatpush1.msra.mxu0 %v1044
      %1118 = vmatprep.subr.mxu0 %v1043
      %1119 = vmatpush1.msra.mxu0 %v1042
      %1120 = vmatprep.subr.mxu0 %v1041
      %1121 = vmatpush1.msra.mxu0 %v1040
      %1122 = vmatprep.subr.mxu0 %v1039
      %1123 = vmatpush1.msra.mxu0 %v1038
      %1124 = vmatprep.subr.mxu0 0.0
      %1125 = vmatpush2.msra.mxu0 0.0
      %1126 = vmatprep.subr.mxu0 0.0
      %1127 = vmatpush2.msra.mxu0 0.0
      %1128 = vmatprep.subr.mxu0 0.0
      %1129 = vmatpush2.msra.mxu0 0.0
      %1130 = vmatprep.subr.mxu0 0.0
      %1131 = vmatpush2.msra.mxu0 0.0
      %1132 = vmatprep.subr.mxu0 0.0
      %1133 = vmatpush2.msra.mxu0 0.0
      %1134 = vmatprep.subr.mxu0 0.0
      %1135 = vmatpush2.msra.mxu0 0.0
      %1136 = vmatprep.subr.mxu0 0.0
      %1137 = vmatpush2.msra.mxu0 0.0
      %1138 = vmatprep.subr.mxu0 0.0
      %1139 = vmatpush2.msra.mxu0 0.0
      %1140 = vmatprep.subr.mxu0 0.0
      %1141 = vmatpush2.msra.mxu0 0.0
      %1142 = vmatprep.subr.mxu0 0.0
      %1143 = vmatpush2.msra.mxu0 0.0
      %1144 = vmatprep.subr.mxu0 0.0
      %1145 = vmatpush2.msra.mxu0 0.0
      %1146 = vmatprep.subr.mxu0 0.0
      %1147 = vmatpush2.msra.mxu0 0.0
      %1148 = vmatprep.subr.mxu0 0.0
      %1149 = vmatpush2.msra.mxu0 0.0
      %1150 = vmatprep.subr.mxu0 0.0
      %1151 = vmatpush2.msra.mxu0 0.0
      %1152 = vmatprep.subr.mxu0 %v1073
      %1153 = vmatpush2.msra.mxu0 %v1072
      %1154 = vmatprep.subr.mxu0 %v1071
      %1155 = vmatpush2.msra.mxu0 %v1070
      %1156 = vmatprep.mubr.f32.mxu0 %v1087
      %1157 = vmatmul.mubr.f32.gmra.mxu0 %v1034
      %v1158 = vpop.f32.mrf.mxu0
      %v1159 = vadd.f32 %v1079, %v1158
      %v1160 = vpop.f32.mrf.mxu0
      %v1161 = vadd.f32 %v1079, %v1160
      %1162 = vmatprep.mubr.f32.mxu0 %v1090
      %1163 = vmatmul.mubr.f32.gmra.mxu0 %v1036
      %v1164 = vpop.f32.mrf.mxu0
      %v1165 = vadd.f32 %v1084, %v1164
      %v1166 = vpop.f32.mrf.mxu0
      %v1167 = vadd.f32 %v1084, %v1166
      %1168 = vdwg.mxu0
      %v1169 = vmax.f32 %v1159, 0.0
      %v1170 = vmax.f32 %v1161, 0.0
      %v1171 = vmax.f32 %v1165, 0.0
      %v1172 = vmax.f32 %v1167, 0.0
      %v1173 = vld [vmem:[%s5] sm:$0xff]
      %v1174 = vld [vmem:[%s5 + $0x8] sm:$0x3]
      %v1175 = vld [vmem:[%s6] sm:$0xff]
      %v1176 = vld [vmem:[%s6 + $0x8] sm:$0x3]
      %1178 = vset.pattern.permute.xlu0 0
      %1179 = vperm.xlu0 %1178, %v1175
      %v1180 = vpop.permute.xlu0 %1179
      %1183 = vset.pattern.permute.xlu0 0
      %1184 = vperm.xlu0 %1183, %v1176
      %v1185 = vpop.permute.xlu0 %1184
      %v1188 = vsel %vm610, %v1173, 0
      %v1191 = vsel %vm610, %v1174, 0
      %1193 = vmatprep.subr.mxu0 0.0
      %1194 = vmatpush1.msra.mxu0 0.0
      %1195 = vmatprep.subr.mxu0 0.0
      %1196 = vmatpush1.msra.mxu0 0.0
      %1197 = vmatprep.subr.mxu0 0.0
      %1198 = vmatpush1.msra.mxu0 0.0
      %1199 = vmatprep.subr.mxu0 0.0
      %1200 = vmatpush1.msra.mxu0 0.0
      %1201 = vmatprep.subr.mxu0 0.0
      %1202 = vmatpush1.msra.mxu0 0.0
      %1203 = vmatprep.subr.mxu0 0.0
      %1204 = vmatpush1.msra.mxu0 0.0
      %1205 = vmatprep.subr.mxu0 0.0
      %1206 = vmatpush1.msra.mxu0 0.0
      %1207 = vmatprep.subr.mxu0 0.0
      %1208 = vmatpush1.msra.mxu0 0.0
      %1209 = vmatprep.subr.mxu0 0.0
      %1210 = vmatpush1.msra.mxu0 0.0
      %1211 = vmatprep.subr.mxu0 0.0
      %1212 = vmatpush1.msra.mxu0 0.0
      %1213 = vmatprep.subr.mxu0 0.0
      %1214 = vmatpush1.msra.mxu0 0.0
      %1215 = vmatprep.subr.mxu0 0.0
      %1216 = vmatpush1.msra.mxu0 0.0
      %1217 = vmatprep.subr.mxu0 0.0
      %1218 = vmatpush1.msra.mxu0 0.0
      %1219 = vmatprep.subr.mxu0 0.0
      %1220 = vmatpush1.msra.mxu0 0.0
      %1221 = vmatprep.subr.mxu0 %v1172
      %1222 = vmatpush1.msra.mxu0 %v1171
      %1223 = vmatprep.subr.mxu0 %v1170
      %1224 = vmatpush1.msra.mxu0 %v1169
      %1225 = vmatprep.subr.mxu0 0.0
      %1226 = vmatpush2.msra.mxu0 0.0
      %1227 = vmatprep.subr.mxu0 0.0
      %1228 = vmatpush2.msra.mxu0 0.0
      %1229 = vmatprep.subr.mxu0 0.0
      %1230 = vmatpush2.msra.mxu0 0.0
      %1231 = vmatprep.subr.mxu0 0.0
      %1232 = vmatpush2.msra.mxu0 0.0
      %1233 = vmatprep.subr.mxu0 0.0
      %1234 = vmatpush2.msra.mxu0 0.0
      %1235 = vmatprep.subr.mxu0 0.0
      %1236 = vmatpush2.msra.mxu0 0.0
      %1237 = vmatprep.subr.mxu0 0.0
      %1238 = vmatpush2.msra.mxu0 0.0
      %1239 = vmatprep.subr.mxu0 0.0
      %1240 = vmatpush2.msra.mxu0 0.0
      %1241 = vmatprep.subr.mxu0 0.0
      %1242 = vmatpush2.msra.mxu0 0.0
      %1243 = vmatprep.subr.mxu0 0.0
      %1244 = vmatpush2.msra.mxu0 0.0
      %1245 = vmatprep.subr.mxu0 0.0
      %1246 = vmatpush2.msra.mxu0 0.0
      %1247 = vmatprep.subr.mxu0 0.0
      %1248 = vmatpush2.msra.mxu0 0.0
      %1249 = vmatprep.subr.mxu0 0.0
      %1250 = vmatpush2.msra.mxu0 0.0
      %1251 = vmatprep.subr.mxu0 0.0
      %1252 = vmatpush2.msra.mxu0 0.0
      %1253 = vmatprep.subr.mxu0 0.0
      %1254 = vmatpush2.msra.mxu0 0.0
      %1255 = vmatprep.subr.mxu0 0.0
      %1256 = vmatpush2.msra.mxu0 0.0
      %1257 = vmatprep.mubr.f32.mxu0 0.0
      %1258 = vmatmul.mubr.f32.gmra.mxu0 %v1188
      %v1259 = vpop.f32.mrf.mxu0
      %v1260 = vadd.f32 %v1180, %v1259
      %v1261 = vpop.f32.mrf.mxu0
      %v1262 = vadd.f32 %v1180, %v1261
      %1263 = vmatprep.mubr.f32.mxu0 0.0
      %1264 = vmatmul.mubr.f32.gmra.mxu0 %v1191
      %v1265 = vpop.f32.mrf.mxu0
      %v1266 = vadd.f32 %v1185, %v1265
      %v1267 = vpop.f32.mrf.mxu0
      %v1268 = vadd.f32 %v1185, %v1267
      %1269 = vdwg.mxu0
      %1274 = vrot.lane.b32.xlu0 %v1260, 17
      %v1275 = vpop.permute.xlu0 %1274
      %1276 = vrot.lane.b32.xlu0 %v1262, 17
      %v1277 = vpop.permute.xlu0 %1276
      %1278 = vrot.lane.b32.xlu0 %v1266, 17
      %v1279 = vpop.permute.xlu0 %1278
      %1280 = vrot.lane.b32.xlu0 %v1268, 17
      %v1281 = vpop.permute.xlu0 %1280
      %v1282 = vsel %vm734, %v1275, %v1277
      %v1283 = vsel %vm734, %v1279, %v1281
      %v1290 = vadd.f32 %v310, %v1275
      %v1291 = vadd.f32 %v311, %v1282
      %v1292 = vadd.f32 %v312, %v1277
      %v1293 = vadd.f32 %v313, %v1279
      %v1294 = vadd.f32 %v314, %v1283
      %v1295 = vadd.f32 %v315, %v1281
      %1302 = vrot.lane.b32.xlu0 %v1290, 111
      %v1303 = vpop.permute.xlu0 %1302
      %1304 = vrot.lane.b32.xlu0 %v1291, 111
      %v1305 = vpop.permute.xlu0 %1304
      %1306 = vrot.lane.b32.xlu0 %v1292, 111
      %v1307 = vpop.permute.xlu0 %1306
      %1308 = vrot.lane.b32.xlu0 %v1293, 111
      %v1309 = vpop.permute.xlu0 %1308
      %1310 = vrot.lane.b32.xlu0 %v1294, 111
      %v1311 = vpop.permute.xlu0 %1310
      %1312 = vrot.lane.b32.xlu0 %v1295, 111
      %v1313 = vpop.permute.xlu0 %1312
      %v1314 = vsel %vm433, %v1303, %v1305
      %v1315 = vsel %vm433, %v1305, %v1307
      %v1316 = vsel %vm433, %v1309, %v1311
      %v1317 = vsel %vm433, %v1311, %v1313
      %1322 = vst [vmem:[%s278] sm:$0xff] %v1314
      %1323 = vst [vmem:[%s278 + $0x8] sm:$0xff] %v1315
      %1324 = vst [vmem:[%s278 + $0x10] sm:$0x3] %v1316
      %1325 = vst [vmem:[%s278 + $0x18] sm:$0x3] %v1317
      %p1326 = scmp.lt.s32.totalorder %s18, 1
      %s1327 = scalar_select %p1326, %s18, 1
      %s1328 = smul.addr %s1327, 4
      %s1329 = smul.addr %s1328, 8
      %s1330 = scalar_lea.vmem %s7, %s1329
      // Predicated region
      $region49: #{task301_forward.1} parent=47 // pred_check
        %p1331 = pneg %p188
      $region50: #{task301_forward.1} parent=47 // pred_check_branch
        %1333 = sbr.rel (%p1331) target = $region52
      $region51: #{task301_forward.1} parent=47 // pred_region
        _
      $region52: #{task301_forward.1} parent=47 // pred_fallthru
        _
    $region48: #{task301_forward.1} parent=5 // pred_fallthru
      _
    %p1334 = scmp.le.s32.totalorder 2, %s13
    // Predicated region
    $region53: #{task301_forward.1} parent=5 // pred_check
      %p1335 = pneg %p1334
    $region54: #{task301_forward.1} parent=5 // pred_check_branch
      %1337 = sbr.rel (%p1335) target = $region56
    $region55: #{task301_forward.1} parent=5 // pred_region
      %s1338 = ssub.s32 %s13, 2
      // Predicated region
      $region57: #{task301_forward.1} parent=55 // pred_check
        %p1339 = pneg %p194
      $region58: #{task301_forward.1} parent=55 // pred_check_branch
        %1341 = sbr.rel (%p1339) target = $region60
      $region59: #{task301_forward.1} parent=55 // pred_region
        %p1342 = scmp.lt.s32.totalorder %s19, 1
        %s1343 = scalar_select %p1342, %s19, 1
        %s1344 = smul.addr %s1343, 4
        %s1345 = smul.addr %s1344, 8
        %s1346 = scalar_lea.vmem %s7, %s1345
      $region60: #{task301_forward.1} parent=55 // pred_fallthru
        _
    $region56: #{task301_forward.1} parent=5 // pred_fallthru
      _
  $region6: #{task301_forward.1} parent=0 // loop_footer
    %s17 = sadd.s32 1, %s13
  $region7: #{task301_forward.1} parent=0 // loop_footer_branch
    %12 = sbr.rel target = $region3
  $region8: #{task301_forward.1} parent=0 // loop_exit
    _

</llo_original>
